<compile_context>
chip_gen: v7x
topology: tpu7x:2x2x1
jax: 0.10.0
libtpu: 0.0.40
codegen_flags: <defaults>
</compile_context>

<pallas_src>
import functools

import jax
import jax.numpy as jnp
from jax.experimental import pallas as pl
from jax.experimental.pallas import tpu as pltpu


def _round_up(x, m):
    return ((x + m - 1) // m) * m


def _pinn_kernel(x_ref, t_ref, w1x_ref, w1t_ref, b1_ref,
                 w2_ref, b2_ref, w3_ref, b3_ref, w4_ref, b4_ref, out_ref):
    # x_ref, t_ref: (1, bn); activations: (50, bn); out_ref: (1, bn).
    x = x_ref[...]
    t = t_ref[...]
    # Layer 1 (K=2): cheaper as a VPU broadcast multiply-add than an MXU pass.
    h = jnp.tanh(w1x_ref[...] * x + w1t_ref[...] * t + b1_ref[...])   # (50, bn)
    h = jnp.tanh(
        jnp.dot(w2_ref[...], h, preferred_element_type=jnp.float32)
        + b2_ref[...])
    h = jnp.tanh(
        jnp.dot(w3_ref[...], h, preferred_element_type=jnp.float32)
        + b3_ref[...])
    out_ref[...] = (
        jnp.dot(w4_ref[...], h, preferred_element_type=jnp.float32)
        + b4_ref[...])


def _resident(shape):
    # Whole (tiny) parameter array resident in VMEM for every grid step.
    return pl.BlockSpec(shape, lambda i: (0,) * len(shape))


@functools.partial(jax.jit, static_argnames=("block_n",))
def pinn_forward(x, t, params, block_n=512):
    """x, t: (N, 1) float32 collocation points. Returns (N, 1) float32."""
    assert block_n % 128 == 0, "block_n must be lane-aligned (multiple of 128)"
    w1, b1, w2, b2, w3, b3, w4, b4 = params   # torch layout: W[out,in], b[out,1]
    n = x.shape[0]

    # Feature-major: put the batch on the lane axis and pad it to a
    # lane-aligned tile (padding is sliced off at the end).
    bn = min(block_n, _round_up(n, 128))
    n_pad = _round_up(n, bn)
    pad = n_pad - n
    xr = jnp.pad(x.reshape(1, n), ((0, 0), (0, pad)))
    tr = jnp.pad(t.reshape(1, n), ((0, 0), (0, pad)))

    # Split the (50, 2) first-layer weight into its x / t columns so the
    # K=2 layer is a pure VPU broadcast FMA (and no (N, 2) concat in HBM).
    w1x = w1[:, 0:1]
    w1t = w1[:, 1:2]

    grid = (n_pad // bn,)
    out = pl.pallas_call(
        _pinn_kernel,
        out_shape=jax.ShapeDtypeStruct((1, n_pad), jnp.float32),
        grid_spec=pltpu.PrefetchScalarGridSpec(
            num_scalar_prefetch=0,
            grid=grid,
            in_specs=[
                pl.BlockSpec((1, bn), lambda i: (0, i)),   # x tile
                pl.BlockSpec((1, bn), lambda i: (0, i)),   # t tile
                _resident(w1x.shape), _resident(w1t.shape), _resident(b1.shape),
                _resident(w2.shape), _resident(b2.shape),
                _resident(w3.shape), _resident(b3.shape),
                _resident(w4.shape), _resident(b4.shape),
            ],
            out_specs=pl.BlockSpec((1, bn), lambda i: (0, i)),
        ),
        compiler_params=pltpu.CompilerParams(
            dimension_semantics=("parallel",)),   # shards grid across v7x TCs
    )(xr, tr, w1x, w1t, b1, w2, b2, w3, b3, w4, b4)
    return out[:, :n].reshape(n, 1)


def init_params(key):
    """Deterministic PyTorch-Linear-style init (uniform +-1/sqrt(fan_in)).

    Weights stored in torch layout [out_features, in_features]; biases [out, 1].
    """
    dims = [(2, 50), (50, 50), (50, 50), (50, 1)]
    params = []
    for (fan_in, fan_out) in dims:
        key, kw, kb = jax.random.split(key, 3)
        bound = 1.0 / jnp.sqrt(jnp.float32(fan_in))
        w = jax.random.uniform(kw, (fan_out, fan_in), jnp.float32,
                               minval=-bound, maxval=bound)
        b = jax.random.uniform(kb, (fan_out, 1), jnp.float32,
                               minval=-bound, maxval=bound)
        params.extend([w, b])
    return tuple(params)


def _reference_forward(x, t, params):
    w1, b1, w2, b2, w3, b3, w4, b4 = params
    inp = jnp.concatenate([x, t], axis=1)            # (N, 2)
    h = jnp.tanh(inp @ w1.T + b1.T)
    h = jnp.tanh(h @ w2.T + b2.T)
    h = jnp.tanh(h @ w3.T + b3.T)
    return h @ w4.T + b4.T


if __name__ == "__main__":
    key = jax.random.PRNGKey(0)
    kp, kx, kt = jax.random.split(key, 3)

    params = init_params(kp)

    # Non-multiple-of-128 batch exercises the padding path; large enough that
    # the grid has >1 step (both v7x TensorCores get work). Still small.
    N = 1000
    x = jax.random.uniform(kx, (N, 1), jnp.float32, minval=-1.0, maxval=1.0)
    t = jax.random.uniform(kt, (N, 1), jnp.float32, minval=0.0, maxval=1.0)

    out = pinn_forward(x, t, params, block_n=512)
    out = jax.block_until_ready(out)

    ref = _reference_forward(x, t, params)
    assert out.shape == (N, 1)
    assert jnp.allclose(out, ref, atol=1e-5, rtol=1e-5)

    print("KERNEL_OK")
</pallas_src>

<mosaic_0001>
module attributes {stable_mosaic.version = 11 : i64} {
  func.func @_pinn_kernel(%arg0: i32, %arg1: memref<1x512xf32, #tpu.memory_space<vmem>>, %arg2: memref<1x512xf32, #tpu.memory_space<vmem>>, %arg3: memref<50x1xf32, #tpu.memory_space<vmem>>, %arg4: memref<50x1xf32, #tpu.memory_space<vmem>>, %arg5: memref<50x1xf32, #tpu.memory_space<vmem>>, %arg6: memref<50x50xf32, #tpu.memory_space<vmem>>, %arg7: memref<50x1xf32, #tpu.memory_space<vmem>>, %arg8: memref<50x50xf32, #tpu.memory_space<vmem>>, %arg9: memref<50x1xf32, #tpu.memory_space<vmem>>, %arg10: memref<1x50xf32, #tpu.memory_space<vmem>>, %arg11: memref<1x1xf32, #tpu.memory_space<vmem>>, %arg12: memref<1x512xf32, #tpu.memory_space<vmem>>) attributes {dimension_semantics = [#tpu.dimension_semantics<parallel>], iteration_bounds = array<i64: 2>, scalar_prefetch = 0 : i64, scratch_operands = 0 : i64, tpu.core_type = #tpu.core_type<tc>, window_params = [{transform_indices = @transform_0, window_bounds = array<i64: 1, 512>}, {transform_indices = @transform_1, window_bounds = array<i64: 1, 512>}, {pipeline_mode = #tpu.pipeline_mode<synchronous>, transform_indices = @transform_2, window_bounds = array<i64: 50, 1>}, {pipeline_mode = #tpu.pipeline_mode<synchronous>, transform_indices = @transform_3, window_bounds = array<i64: 50, 1>}, {pipeline_mode = #tpu.pipeline_mode<synchronous>, transform_indices = @transform_4, window_bounds = array<i64: 50, 1>}, {pipeline_mode = #tpu.pipeline_mode<synchronous>, transform_indices = @transform_5, window_bounds = array<i64: 50, 50>}, {pipeline_mode = #tpu.pipeline_mode<synchronous>, transform_indices = @transform_6, window_bounds = array<i64: 50, 1>}, {pipeline_mode = #tpu.pipeline_mode<synchronous>, transform_indices = @transform_7, window_bounds = array<i64: 50, 50>}, {pipeline_mode = #tpu.pipeline_mode<synchronous>, transform_indices = @transform_8, window_bounds = array<i64: 50, 1>}, {pipeline_mode = #tpu.pipeline_mode<synchronous>, transform_indices = @transform_9, window_bounds = array<i64: 1, 50>}, {pipeline_mode = #tpu.pipeline_mode<synchronous>, transform_indices = @transform_10, window_bounds = array<i64: 1, 1>}, {transform_indices = @transform_11, window_bounds = array<i64: 1, 512>}]} {
    %c0 = arith.constant 0 : index
    %c0_0 = arith.constant 0 : index
    %0 = vector.load %arg1[%c0, %c0_0] : memref<1x512xf32, #tpu.memory_space<vmem>>, vector<1x512xf32>
    %c0_1 = arith.constant 0 : index
    %c0_2 = arith.constant 0 : index
    %1 = vector.load %arg2[%c0_1, %c0_2] : memref<1x512xf32, #tpu.memory_space<vmem>>, vector<1x512xf32>
    %c0_3 = arith.constant 0 : index
    %c0_4 = arith.constant 0 : index
    %2 = vector.load %arg3[%c0_3, %c0_4] : memref<50x1xf32, #tpu.memory_space<vmem>>, vector<50x1xf32>
    %3 = vector.broadcast %2 : vector<50x1xf32> to vector<50x512xf32>
    %4 = vector.broadcast %0 : vector<1x512xf32> to vector<50x512xf32>
    %5 = arith.mulf %3, %4 : vector<50x512xf32>
    %c0_5 = arith.constant 0 : index
    %c0_6 = arith.constant 0 : index
    %6 = vector.load %arg4[%c0_5, %c0_6] : memref<50x1xf32, #tpu.memory_space<vmem>>, vector<50x1xf32>
    %7 = vector.broadcast %6 : vector<50x1xf32> to vector<50x512xf32>
    %8 = vector.broadcast %1 : vector<1x512xf32> to vector<50x512xf32>
    %9 = arith.mulf %7, %8 : vector<50x512xf32>
    %10 = arith.addf %5, %9 : vector<50x512xf32>
    %c0_7 = arith.constant 0 : index
    %c0_8 = arith.constant 0 : index
    %11 = vector.load %arg5[%c0_7, %c0_8] : memref<50x1xf32, #tpu.memory_space<vmem>>, vector<50x1xf32>
    %12 = vector.broadcast %11 : vector<50x1xf32> to vector<50x512xf32>
    %13 = arith.addf %10, %12 : vector<50x512xf32>
    %14 = math.tanh %13 : vector<50x512xf32>
    %c0_9 = arith.constant 0 : index
    %c0_10 = arith.constant 0 : index
    %15 = vector.load %arg6[%c0_9, %c0_10] : memref<50x50xf32, #tpu.memory_space<vmem>>, vector<50x50xf32>
    %cst = arith.constant dense<0.000000e+00> : vector<50x512xf32>
    %16 = tpu.matmul %15, %14, %cst {dimension_numbers = #tpu.dot_dimension_numbers<[1], [0], [0], [1], [0, 0, 1, 1], [], []>} : vector<50x50xf32>, vector<50x512xf32>, vector<50x512xf32> -> vector<50x512xf32>
    %c0_11 = arith.constant 0 : index
    %c0_12 = arith.constant 0 : index
    %17 = vector.load %arg7[%c0_11, %c0_12] : memref<50x1xf32, #tpu.memory_space<vmem>>, vector<50x1xf32>
    %18 = vector.broadcast %17 : vector<50x1xf32> to vector<50x512xf32>
    %19 = arith.addf %16, %18 : vector<50x512xf32>
    %20 = math.tanh %19 : vector<50x512xf32>
    %c0_13 = arith.constant 0 : index
    %c0_14 = arith.constant 0 : index
    %21 = vector.load %arg8[%c0_13, %c0_14] : memref<50x50xf32, #tpu.memory_space<vmem>>, vector<50x50xf32>
    %cst_15 = arith.constant dense<0.000000e+00> : vector<50x512xf32>
    %22 = tpu.matmul %21, %20, %cst_15 {dimension_numbers = #tpu.dot_dimension_numbers<[1], [0], [0], [1], [0, 0, 1, 1], [], []>} : vector<50x50xf32>, vector<50x512xf32>, vector<50x512xf32> -> vector<50x512xf32>
    %c0_16 = arith.constant 0 : index
    %c0_17 = arith.constant 0 : index
    %23 = vector.load %arg9[%c0_16, %c0_17] : memref<50x1xf32, #tpu.memory_space<vmem>>, vector<50x1xf32>
    %24 = vector.broadcast %23 : vector<50x1xf32> to vector<50x512xf32>
    %25 = arith.addf %22, %24 : vector<50x512xf32>
    %26 = math.tanh %25 : vector<50x512xf32>
    %c0_18 = arith.constant 0 : index
    %c0_19 = arith.constant 0 : index
    %27 = vector.load %arg10[%c0_18, %c0_19] : memref<1x50xf32, #tpu.memory_space<vmem>>, vector<1x50xf32>
    %cst_20 = arith.constant dense<0.000000e+00> : vector<1x512xf32>
    %28 = tpu.matmul %27, %26, %cst_20 {dimension_numbers = #tpu.dot_dimension_numbers<[1], [0], [0], [1], [0, 0, 1, 1], [], []>} : vector<1x50xf32>, vector<50x512xf32>, vector<1x512xf32> -> vector<1x512xf32>
    %c0_21 = arith.constant 0 : index
    %c0_22 = arith.constant 0 : index
    %29 = vector.load %arg11[%c0_21, %c0_22] : memref<1x1xf32, #tpu.memory_space<vmem>>, vector<1x1xf32>
    %30 = vector.broadcast %29 : vector<1x1xf32> to vector<1x512xf32>
    %31 = arith.addf %28, %30 : vector<1x512xf32>
    %c0_23 = arith.constant 0 : index
    %c0_24 = arith.constant 0 : index
    %32 = vector.load %arg12[%c0_23, %c0_24] : memref<1x512xf32, #tpu.memory_space<vmem>>, vector<1x512xf32>
    tpu.vector_store %arg12[%c0_23, %c0_24], %31 {strides = array<i32>} : memref<1x512xf32, #tpu.memory_space<vmem>>, vector<1x512xf32>,
    return
  }
  func.func @transform_0(%arg0: i32) -> (i32, i32) {
    %c0_i32 = arith.constant 0 : i32
    %c0_i32_0 = arith.constant 0 : i32
    return %c0_i32, %arg0 : i32, i32
  }
  func.func @transform_1(%arg0: i32) -> (i32, i32) {
    %c0_i32 = arith.constant 0 : i32
    %c0_i32_0 = arith.constant 0 : i32
    return %c0_i32, %arg0 : i32, i32
  }
  func.func @transform_2(%arg0: i32) -> (i32, i32) {
    %c0_i32 = arith.constant 0 : i32
    %c0_i32_0 = arith.constant 0 : i32
    %c0_i32_1 = arith.constant 0 : i32
    return %c0_i32, %c0_i32_0 : i32, i32
  }
  func.func @transform_3(%arg0: i32) -> (i32, i32) {
    %c0_i32 = arith.constant 0 : i32
    %c0_i32_0 = arith.constant 0 : i32
    %c0_i32_1 = arith.constant 0 : i32
    return %c0_i32, %c0_i32_0 : i32, i32
  }
  func.func @transform_4(%arg0: i32) -> (i32, i32) {
    %c0_i32 = arith.constant 0 : i32
    %c0_i32_0 = arith.constant 0 : i32
    %c0_i32_1 = arith.constant 0 : i32
    return %c0_i32, %c0_i32_0 : i32, i32
  }
  func.func @transform_5(%arg0: i32) -> (i32, i32) {
    %c0_i32 = arith.constant 0 : i32
    %c0_i32_0 = arith.constant 0 : i32
    %c0_i32_1 = arith.constant 0 : i32
    return %c0_i32, %c0_i32_0 : i32, i32
  }
  func.func @transform_6(%arg0: i32) -> (i32, i32) {
    %c0_i32 = arith.constant 0 : i32
    %c0_i32_0 = arith.constant 0 : i32
    %c0_i32_1 = arith.constant 0 : i32
    return %c0_i32, %c0_i32_0 : i32, i32
  }
  func.func @transform_7(%arg0: i32) -> (i32, i32) {
    %c0_i32 = arith.constant 0 : i32
    %c0_i32_0 = arith.constant 0 : i32
    %c0_i32_1 = arith.constant 0 : i32
    return %c0_i32, %c0_i32_0 : i32, i32
  }
  func.func @transform_8(%arg0: i32) -> (i32, i32) {
    %c0_i32 = arith.constant 0 : i32
    %c0_i32_0 = arith.constant 0 : i32
    %c0_i32_1 = arith.constant 0 : i32
    return %c0_i32, %c0_i32_0 : i32, i32
  }
  func.func @transform_9(%arg0: i32) -> (i32, i32) {
    %c0_i32 = arith.constant 0 : i32
    %c0_i32_0 = arith.constant 0 : i32
    %c0_i32_1 = arith.constant 0 : i32
    return %c0_i32, %c0_i32_0 : i32, i32
  }
  func.func @transform_10(%arg0: i32) -> (i32, i32) {
    %c0_i32 = arith.constant 0 : i32
    %c0_i32_0 = arith.constant 0 : i32
    %c0_i32_1 = arith.constant 0 : i32
    return %c0_i32, %c0_i32_0 : i32, i32
  }
  func.func @transform_11(%arg0: i32) -> (i32, i32) {
    %c0_i32 = arith.constant 0 : i32
    %c0_i32_0 = arith.constant 0 : i32
    return %c0_i32, %arg0 : i32, i32
  }
}

</mosaic_0001>

<llo_original>
// kernel: pinn_forward.1
$region0: #{pinn_forward.1}
  #allocation0 [shape = 'u32[]', space=smem, size = 0x4, offset = 0x4, fixed_abs, tag = 'smem constant byte address 0x4 - core index']
  #allocation1 [shape = 'u32[144,128]{1,0:T(1,128)}', space=vmem, size = 0x12000, scoped, tag = 'internal scratch']
  #allocation2 [shape = 'f32[1,1]{1,0:T(1,128)S(1)}', space=vmem, size = 0x200, scoped, tag = 'scoped memory for pinn_forward.1']
  %s0 = inlined_call_operand.vmem [shape: f32[1,1024], index: 0, kind: input, shape index: {}]
  %s1 = inlined_call_operand.vmem [shape: f32[1,1024], index: 1, kind: input, shape index: {}]
  %s2 = inlined_call_operand.vmem [shape: f32[50,1], index: 2, kind: input, shape index: {}]
  %s3 = inlined_call_operand.vmem [shape: f32[50,1], index: 3, kind: input, shape index: {}]
  %s4 = inlined_call_operand.vmem [shape: f32[50,1], index: 4, kind: input, shape index: {}]
  %s5 = inlined_call_operand.vmem [shape: f32[50,50], index: 5, kind: input, shape index: {}]
  %s6 = inlined_call_operand.vmem [shape: f32[50,1], index: 6, kind: input, shape index: {}]
  %s7 = inlined_call_operand.vmem [shape: f32[50,50], index: 7, kind: input, shape index: {}]
  %s8 = inlined_call_operand.vmem [shape: f32[50,1], index: 8, kind: input, shape index: {}]
  %s9 = inlined_call_operand.vmem [shape: f32[1,50], index: 9, kind: input, shape index: {}]
  %s10 = inlined_call_operand.<no memory space> [shape: f32[1,1], index: 10, kind: input, shape index: {}]
  %s11 = inlined_call_operand.vmem [shape: f32[1,1024], index: 11, kind: output, shape index: {}]
  %s12 = sld [smem:[#allocation0]]
  $region77: #{pinn_forward.1} parent=0
    _
  %s14 = ssub.s32 1, %s12
  %s15 = scalar_select 0, %s14, %s12
  %v16 = vstv %s10
  %17 = vst [vmem:[#allocation2] sm:$0x1] %v16
  loop: start=0, step=1, limit=4
  $region2: #{pinn_forward.1} parent=0 // loop_pre_header
    _
  $region3: #{pinn_forward.1} parent=0 // loop_header
    %s19 = sphi 0, %s23
    %p20 = scmp.ge.s32.totalorder %s19, 4
    %s29 = sphi 0, %s31
    %s32 = sphi 0, %s29
    %s33 = sphi 0, %s32
    %s49 = sphi 0, %s33
    %s55 = sphi 0, %s57
    %s58 = sphi 0, %s55
    %s59 = sphi 0, %s58
    %s75 = sphi 0, %s59
    %s79 = sphi 0, %s79
    %s81 = sphi 0, %s79
    %s82 = sphi 0, %s81
    %s96 = sphi 0, %s82
    %s100 = sphi 0, %s100
    %s102 = sphi 0, %s100
    %s103 = sphi 0, %s102
    %s117 = sphi 0, %s103
    %s121 = sphi 0, %s121
    %s123 = sphi 0, %s121
    %s124 = sphi 0, %s123
    %s138 = sphi 0, %s124
    %s142 = sphi 0, %s142
    %s144 = sphi 0, %s142
    %s145 = sphi 0, %s144
    %s159 = sphi 0, %s145
    %s163 = sphi 0, %s163
    %s165 = sphi 0, %s163
    %s166 = sphi 0, %s165
    %s180 = sphi 0, %s166
    %s184 = sphi 0, %s184
    %s186 = sphi 0, %s184
    %s187 = sphi 0, %s186
    %s201 = sphi 0, %s187
    %s205 = sphi 0, %s205
    %s207 = sphi 0, %s205
    %s208 = sphi 0, %s207
    %s222 = sphi 0, %s208
    %s226 = sphi 0, %s226
    %s228 = sphi 0, %s226
    %s229 = sphi 0, %s228
    %s243 = sphi 0, %s229
    %s247 = sphi 0, %s247
    %s249 = sphi 0, %s247
    %s250 = sphi 0, %s249
    %s264 = sphi 0, %s250
    %s270 = sphi 0, %s272
    %s273 = sphi 0, %s270
    %s274 = sphi 0, %s273
    %s290 = sphi 0, %s274
  $region4: #{pinn_forward.1} parent=0 // loop_header_branch
    %22 = sbr.rel (%p20) target = $region8
  $region5: #{pinn_forward.1} parent=0 // loop_body
    %s24 = ssub.s32 %s19, 1
    %s25 = ssub.s32 %s19, 2
    %s26 = sadd.s32 %s19, 1
    %s27 = ssub.s32 %s19, %s26
    %p28 = scmp.eq.s32.totalorder %s27, 0
    %s30 = sadd.s32 %s29, 1
    %s31 = scalar_select %p28, %s29, %s30
    %p34 = pneg %p28
    %p35 = scmp.eq.s32.totalorder %s19, 1
    %p36 = por %p34, %p35
    %p37 = scmp.ne.s32.totalorder %s29, %s32
    %p38 = scmp.eq.s32.totalorder %s19, 0
    %p39 = por %p37, %p38
    %p40 = scmp.ne.s32.totalorder %s29, %s32
    %p41 = scmp.eq.s32.totalorder %s24, 1
    %p42 = por %p40, %p41
    %p43 = scmp.ne.s32.totalorder %s32, %s33
    %p44 = scmp.eq.s32.totalorder %s24, 0
    %p45 = por %p43, %p44
    %p46 = scmp.ne.s32.totalorder %s32, %s33
    %p47 = scmp.eq.s32.totalorder %s25, 1
    %p48 = por %p46, %p47
    %p50 = scmp.ne.s32.totalorder %s33, %s49
    %p51 = scmp.eq.s32.totalorder %s25, 0
    %p52 = por %p50, %p51
    %s53 = ssub.s32 %s19, %s26
    %p54 = scmp.eq.s32.totalorder %s53, 0
    %s56 = sadd.s32 %s55, 1
    %s57 = scalar_select %p54, %s55, %s56
    %p60 = pneg %p54
    %p61 = scmp.eq.s32.totalorder %s19, 1
    %p62 = por %p60, %p61
    %p63 = scmp.ne.s32.totalorder %s55, %s58
    %p64 = scmp.eq.s32.totalorder %s19, 0
    %p65 = por %p63, %p64
    %p66 = scmp.ne.s32.totalorder %s55, %s58
    %p67 = scmp.eq.s32.totalorder %s24, 1
    %p68 = por %p66, %p67
    %p69 = scmp.ne.s32.totalorder %s58, %s59
    %p70 = scmp.eq.s32.totalorder %s24, 0
    %p71 = por %p69, %p70
    %p72 = scmp.ne.s32.totalorder %s58, %s59
    %p73 = scmp.eq.s32.totalorder %s25, 1
    %p74 = por %p72, %p73
    %p76 = scmp.ne.s32.totalorder %s59, %s75
    %p77 = scmp.eq.s32.totalorder %s25, 0
    %p78 = por %p76, %p77
    %s80 = sadd.s32 %s79, 1
    %p83 = scmp.eq.s32.totalorder %s19, 1
    %p84 = scmp.ne.s32.totalorder %s79, %s81
    %p85 = scmp.eq.s32.totalorder %s19, 0
    %p86 = por %p84, %p85
    %p87 = scmp.ne.s32.totalorder %s79, %s81
    %p88 = scmp.eq.s32.totalorder %s24, 1
    %p89 = por %p87, %p88
    %p90 = scmp.ne.s32.totalorder %s81, %s82
    %p91 = scmp.eq.s32.totalorder %s24, 0
    %p92 = por %p90, %p91
    %p93 = scmp.ne.s32.totalorder %s81, %s82
    %p94 = scmp.eq.s32.totalorder %s25, 1
    %p95 = por %p93, %p94
    %p97 = scmp.ne.s32.totalorder %s82, %s96
    %p98 = scmp.eq.s32.totalorder %s25, 0
    %p99 = por %p97, %p98
    %s101 = sadd.s32 %s100, 1
    %p104 = scmp.eq.s32.totalorder %s19, 1
    %p105 = scmp.ne.s32.totalorder %s100, %s102
    %p106 = scmp.eq.s32.totalorder %s19, 0
    %p107 = por %p105, %p106
    %p108 = scmp.ne.s32.totalorder %s100, %s102
    %p109 = scmp.eq.s32.totalorder %s24, 1
    %p110 = por %p108, %p109
    %p111 = scmp.ne.s32.totalorder %s102, %s103
    %p112 = scmp.eq.s32.totalorder %s24, 0
    %p113 = por %p111, %p112
    %p114 = scmp.ne.s32.totalorder %s102, %s103
    %p115 = scmp.eq.s32.totalorder %s25, 1
    %p116 = por %p114, %p115
    %p118 = scmp.ne.s32.totalorder %s103, %s117
    %p119 = scmp.eq.s32.totalorder %s25, 0
    %p120 = por %p118, %p119
    %s122 = sadd.s32 %s121, 1
    %p125 = scmp.eq.s32.totalorder %s19, 1
    %p126 = scmp.ne.s32.totalorder %s121, %s123
    %p127 = scmp.eq.s32.totalorder %s19, 0
    %p128 = por %p126, %p127
    %p129 = scmp.ne.s32.totalorder %s121, %s123
    %p130 = scmp.eq.s32.totalorder %s24, 1
    %p131 = por %p129, %p130
    %p132 = scmp.ne.s32.totalorder %s123, %s124
    %p133 = scmp.eq.s32.totalorder %s24, 0
    %p134 = por %p132, %p133
    %p135 = scmp.ne.s32.totalorder %s123, %s124
    %p136 = scmp.eq.s32.totalorder %s25, 1
    %p137 = por %p135, %p136
    %p139 = scmp.ne.s32.totalorder %s124, %s138
    %p140 = scmp.eq.s32.totalorder %s25, 0
    %p141 = por %p139, %p140
    %s143 = sadd.s32 %s142, 1
    %p146 = scmp.eq.s32.totalorder %s19, 1
    %p147 = scmp.ne.s32.totalorder %s142, %s144
    %p148 = scmp.eq.s32.totalorder %s19, 0
    %p149 = por %p147, %p148
    %p150 = scmp.ne.s32.totalorder %s142, %s144
    %p151 = scmp.eq.s32.totalorder %s24, 1
    %p152 = por %p150, %p151
    %p153 = scmp.ne.s32.totalorder %s144, %s145
    %p154 = scmp.eq.s32.totalorder %s24, 0
    %p155 = por %p153, %p154
    %p156 = scmp.ne.s32.totalorder %s144, %s145
    %p157 = scmp.eq.s32.totalorder %s25, 1
    %p158 = por %p156, %p157
    %p160 = scmp.ne.s32.totalorder %s145, %s159
    %p161 = scmp.eq.s32.totalorder %s25, 0
    %p162 = por %p160, %p161
    %s164 = sadd.s32 %s163, 1
    %p167 = scmp.eq.s32.totalorder %s19, 1
    %p168 = scmp.ne.s32.totalorder %s163, %s165
    %p169 = scmp.eq.s32.totalorder %s19, 0
    %p170 = por %p168, %p169
    %p171 = scmp.ne.s32.totalorder %s163, %s165
    %p172 = scmp.eq.s32.totalorder %s24, 1
    %p173 = por %p171, %p172
    %p174 = scmp.ne.s32.totalorder %s165, %s166
    %p175 = scmp.eq.s32.totalorder %s24, 0
    %p176 = por %p174, %p175
    %p177 = scmp.ne.s32.totalorder %s165, %s166
    %p178 = scmp.eq.s32.totalorder %s25, 1
    %p179 = por %p177, %p178
    %p181 = scmp.ne.s32.totalorder %s166, %s180
    %p182 = scmp.eq.s32.totalorder %s25, 0
    %p183 = por %p181, %p182
    %s185 = sadd.s32 %s184, 1
    %p188 = scmp.eq.s32.totalorder %s19, 1
    %p189 = scmp.ne.s32.totalorder %s184, %s186
    %p190 = scmp.eq.s32.totalorder %s19, 0
    %p191 = por %p189, %p190
    %p192 = scmp.ne.s32.totalorder %s184, %s186
    %p193 = scmp.eq.s32.totalorder %s24, 1
    %p194 = por %p192, %p193
    %p195 = scmp.ne.s32.totalorder %s186, %s187
    %p196 = scmp.eq.s32.totalorder %s24, 0
    %p197 = por %p195, %p196
    %p198 = scmp.ne.s32.totalorder %s186, %s187
    %p199 = scmp.eq.s32.totalorder %s25, 1
    %p200 = por %p198, %p199
    %p202 = scmp.ne.s32.totalorder %s187, %s201
    %p203 = scmp.eq.s32.totalorder %s25, 0
    %p204 = por %p202, %p203
    %s206 = sadd.s32 %s205, 1
    %p209 = scmp.eq.s32.totalorder %s19, 1
    %p210 = scmp.ne.s32.totalorder %s205, %s207
    %p211 = scmp.eq.s32.totalorder %s19, 0
    %p212 = por %p210, %p211
    %p213 = scmp.ne.s32.totalorder %s205, %s207
    %p214 = scmp.eq.s32.totalorder %s24, 1
    %p215 = por %p213, %p214
    %p216 = scmp.ne.s32.totalorder %s207, %s208
    %p217 = scmp.eq.s32.totalorder %s24, 0
    %p218 = por %p216, %p217
    %p219 = scmp.ne.s32.totalorder %s207, %s208
    %p220 = scmp.eq.s32.totalorder %s25, 1
    %p221 = por %p219, %p220
    %p223 = scmp.ne.s32.totalorder %s208, %s222
    %p224 = scmp.eq.s32.totalorder %s25, 0
    %p225 = por %p223, %p224
    %s227 = sadd.s32 %s226, 1
    %p230 = scmp.eq.s32.totalorder %s19, 1
    %p231 = scmp.ne.s32.totalorder %s226, %s228
    %p232 = scmp.eq.s32.totalorder %s19, 0
    %p233 = por %p231, %p232
    %p234 = scmp.ne.s32.totalorder %s226, %s228
    %p235 = scmp.eq.s32.totalorder %s24, 1
    %p236 = por %p234, %p235
    %p237 = scmp.ne.s32.totalorder %s228, %s229
    %p238 = scmp.eq.s32.totalorder %s24, 0
    %p239 = por %p237, %p238
    %p240 = scmp.ne.s32.totalorder %s228, %s229
    %p241 = scmp.eq.s32.totalorder %s25, 1
    %p242 = por %p240, %p241
    %p244 = scmp.ne.s32.totalorder %s229, %s243
    %p245 = scmp.eq.s32.totalorder %s25, 0
    %p246 = por %p244, %p245
    %s248 = sadd.s32 %s247, 1
    %p251 = scmp.eq.s32.totalorder %s19, 1
    %p252 = scmp.ne.s32.totalorder %s247, %s249
    %p253 = scmp.eq.s32.totalorder %s19, 0
    %p254 = por %p252, %p253
    %p255 = scmp.ne.s32.totalorder %s247, %s249
    %p256 = scmp.eq.s32.totalorder %s24, 1
    %p257 = por %p255, %p256
    %p258 = scmp.ne.s32.totalorder %s249, %s250
    %p259 = scmp.eq.s32.totalorder %s24, 0
    %p260 = por %p258, %p259
    %p261 = scmp.ne.s32.totalorder %s249, %s250
    %p262 = scmp.eq.s32.totalorder %s25, 1
    %p263 = por %p261, %p262
    %p265 = scmp.ne.s32.totalorder %s250, %s264
    %p266 = scmp.eq.s32.totalorder %s25, 0
    %p267 = por %p265, %p266
    %s268 = ssub.s32 %s19, %s26
    %p269 = scmp.eq.s32.totalorder %s268, 0
    %s271 = sadd.s32 %s270, 1
    %s272 = scalar_select %p269, %s270, %s271
    %p275 = pneg %p269
    %p276 = scmp.eq.s32.totalorder %s19, 1
    %p277 = por %p275, %p276
    %p278 = scmp.ne.s32.totalorder %s270, %s273
    %p279 = scmp.eq.s32.totalorder %s19, 0
    %p280 = por %p278, %p279
    %p281 = scmp.ne.s32.totalorder %s270, %s273
    %p282 = scmp.eq.s32.totalorder %s24, 1
    %p283 = por %p281, %p282
    %p284 = scmp.ne.s32.totalorder %s273, %s274
    %p285 = scmp.eq.s32.totalorder %s24, 0
    %p286 = por %p284, %p285
    %p287 = scmp.ne.s32.totalorder %s273, %s274
    %p288 = scmp.eq.s32.totalorder %s25, 1
    %p289 = por %p287, %p288
    %p291 = scmp.ne.s32.totalorder %s274, %s290
    %p292 = scmp.eq.s32.totalorder %s25, 0
    %p293 = por %p291, %p292
    %p294 = scmp.le.s32.totalorder 1, %s19
    %p295 = scmp.lt.s32.totalorder %s19, 3
    %p296 = pnand %p294, %p295
    %p297 = pneg %p296
    // Predicated region
    $region9: #{pinn_forward.1} parent=5 // pred_check
      _
    $region10: #{pinn_forward.1} parent=5 // pred_check_branch
      %299 = sbr.rel (%p296) target = $region12
    $region11: #{pinn_forward.1} parent=5 // pred_region
      %s300 = ssub.s32 %s19, 1
      // Predicated region
      $region13: #{pinn_forward.1} parent=11 // pred_check
        %p301 = pneg %p92
      $region14: #{pinn_forward.1} parent=11 // pred_check_branch
        %303 = sbr.rel (%p301) target = $region16
      $region15: #{pinn_forward.1} parent=11 // pred_region
        _
      $region16: #{pinn_forward.1} parent=11 // pred_fallthru
        _
      // Predicated region
      $region17: #{pinn_forward.1} parent=11 // pred_check
        %p304 = pneg %p113
      $region18: #{pinn_forward.1} parent=11 // pred_check_branch
        %306 = sbr.rel (%p304) target = $region20
      $region19: #{pinn_forward.1} parent=11 // pred_region
        _
      $region20: #{pinn_forward.1} parent=11 // pred_fallthru
        _
      // Predicated region
      $region21: #{pinn_forward.1} parent=11 // pred_check
        %p307 = pneg %p134
      $region22: #{pinn_forward.1} parent=11 // pred_check_branch
        %309 = sbr.rel (%p307) target = $region24
      $region23: #{pinn_forward.1} parent=11 // pred_region
        _
      $region24: #{pinn_forward.1} parent=11 // pred_fallthru
        _
      // Predicated region
      $region25: #{pinn_forward.1} parent=11 // pred_check
        %p310 = pneg %p155
      $region26: #{pinn_forward.1} parent=11 // pred_check_branch
        %312 = sbr.rel (%p310) target = $region28
      $region27: #{pinn_forward.1} parent=11 // pred_region
        _
      $region28: #{pinn_forward.1} parent=11 // pred_fallthru
        _
      // Predicated region
      $region29: #{pinn_forward.1} parent=11 // pred_check
        %p313 = pneg %p176
      $region30: #{pinn_forward.1} parent=11 // pred_check_branch
        %315 = sbr.rel (%p313) target = $region32
      $region31: #{pinn_forward.1} parent=11 // pred_region
        _
      $region32: #{pinn_forward.1} parent=11 // pred_fallthru
        _
      // Predicated region
      $region33: #{pinn_forward.1} parent=11 // pred_check
        %p316 = pneg %p197
      $region34: #{pinn_forward.1} parent=11 // pred_check_branch
        %318 = sbr.rel (%p316) target = $region36
      $region35: #{pinn_forward.1} parent=11 // pred_region
        _
      $region36: #{pinn_forward.1} parent=11 // pred_fallthru
        _
      // Predicated region
      $region37: #{pinn_forward.1} parent=11 // pred_check
        %p319 = pneg %p218
      $region38: #{pinn_forward.1} parent=11 // pred_check_branch
        %321 = sbr.rel (%p319) target = $region40
      $region39: #{pinn_forward.1} parent=11 // pred_region
        _
      $region40: #{pinn_forward.1} parent=11 // pred_fallthru
        _
      // Predicated region
      $region41: #{pinn_forward.1} parent=11 // pred_check
        %p322 = pneg %p239
      $region42: #{pinn_forward.1} parent=11 // pred_check_branch
        %324 = sbr.rel (%p322) target = $region44
      $region43: #{pinn_forward.1} parent=11 // pred_region
        _
      $region44: #{pinn_forward.1} parent=11 // pred_fallthru
        _
      // Predicated region
      $region45: #{pinn_forward.1} parent=11 // pred_check
        %p325 = pneg %p260
      $region46: #{pinn_forward.1} parent=11 // pred_check_branch
        %327 = sbr.rel (%p325) target = $region48
      $region47: #{pinn_forward.1} parent=11 // pred_region
        _
      $region48: #{pinn_forward.1} parent=11 // pred_fallthru
        _
    $region12: #{pinn_forward.1} parent=5 // pred_fallthru
      _
    %p328 = scmp.lt.s32.totalorder %s19, 2
    // Predicated region
    $region49: #{pinn_forward.1} parent=5 // pred_check
      %p329 = pneg %p328
    $region50: #{pinn_forward.1} parent=5 // pred_check_branch
      %331 = sbr.rel (%p329) target = $region52
    $region51: #{pinn_forward.1} parent=5 // pred_region
      // Predicated region
      $region53: #{pinn_forward.1} parent=51 // pred_check
        %p332 = pneg %p39
      $region54: #{pinn_forward.1} parent=51 // pred_check_branch
        %334 = sbr.rel (%p332) target = $region56
      $region55: #{pinn_forward.1} parent=51 // pred_region
        %s335 = smul.u32 4, %s19
        %p336 = scmp.lt.s32.totalorder %s335, 7
        %s337 = scalar_select %p336, %s335, 7
        %s338 = scalar_lea.vmem %s0, %s337
        %s339 = smul.u32 4, %s19
      $region56: #{pinn_forward.1} parent=51 // pred_fallthru
        _
      // Predicated region
      $region57: #{pinn_forward.1} parent=51 // pred_check
        %p340 = pneg %p65
      $region58: #{pinn_forward.1} parent=51 // pred_check_branch
        %342 = sbr.rel (%p340) target = $region60
      $region59: #{pinn_forward.1} parent=51 // pred_region
        %s343 = smul.u32 4, %s19
        %p344 = scmp.lt.s32.totalorder %s343, 7
        %s345 = scalar_select %p344, %s343, 7
        %s346 = scalar_lea.vmem %s1, %s345
        %s347 = smul.u32 4, %s19
      $region60: #{pinn_forward.1} parent=51 // pred_fallthru
        _
    $region52: #{pinn_forward.1} parent=5 // pred_fallthru
      _
    %p348 = scmp.le.s32.totalorder 1, %s19
    %p349 = scmp.lt.s32.totalorder %s19, 3
    %p350 = pnand %p348, %p349
    %p351 = pneg %p350
    // Predicated region
    $region61: #{pinn_forward.1} parent=5 // pred_check
      _
    $region62: #{pinn_forward.1} parent=5 // pred_check_branch
      %353 = sbr.rel (%p350) target = $region64
    $region63: #{pinn_forward.1} parent=5 // pred_region
      %s354 = ssub.s32 %s19, 1
      %s355 = smul.u32 4, %s24
      %p356 = scmp.lt.s32.totalorder %s355, 7
      %s357 = scalar_select %p356, %s355, 7
      %s358 = scalar_lea.vmem %s0, %s357
      %p359 = pneg %p45
      %p360 = pneg %p42
      %s361 = smul.u32 4, %s24
      %p362 = scmp.lt.s32.totalorder %s361, 7
      %s363 = scalar_select %p362, %s361, 7
      %s364 = scalar_lea.vmem %s1, %s363
      %p365 = pneg %p71
      %p366 = pneg %p68
      %p367 = pneg %p92
      %p368 = pneg %p89
      %p369 = pneg %p113
      %p370 = pneg %p110
      %p371 = pneg %p134
      %p372 = pneg %p131
      %p373 = pneg %p155
      %p374 = pneg %p152
      %p375 = pneg %p176
      %p376 = pneg %p173
      %p377 = pneg %p197
      %p378 = pneg %p194
      %p379 = pneg %p218
      %p380 = pneg %p215
      %p381 = pneg %p239
      %p382 = pneg %p236
      %p383 = pneg %p260
      %p384 = pneg %p257
      %p385 = pneg %p286
      %p386 = pneg %p283
      %s387 = smul.u32 4, %s24
      %p388 = scmp.lt.s32.totalorder %s387, 7
      %s389 = scalar_select %p388, %s387, 7
      %s390 = scalar_lea.vmem %s11, %s389
      %s391 = smul.u32 4, %s24
      %p392 = scmp.lt.s32.totalorder %s391, 7
      %s393 = scalar_select %p392, %s391, 7
      %s394 = scalar_lea.vmem %s0, %s393
      %s395 = smul.u32 4, %s24
      %s396 = smul.u32 4, %s24
      %p397 = scmp.lt.s32.totalorder %s396, 7
      %s398 = scalar_select %p397, %s396, 7
      %s399 = scalar_lea.vmem %s1, %s398
      %s400 = smul.u32 4, %s24
      %s401 = smul.u32 4, %s24
      %p402 = scmp.lt.s32.totalorder %s401, 7
      %s403 = scalar_select %p402, %s401, 7
      %s404 = scalar_lea.vmem %s11, %s403
      %s405 = smul.u32 4, %s24
      %v406 = vld [vmem:[%s394] sm:$0xf]
      %v407 = vld [vmem:[%s399] sm:$0xf]
      %v408 = vld [vmem:[%s2] sm:$0xff]
      %v409 = vld [vmem:[%s2 + $0x8] sm:$0xff]
      %v410 = vld [vmem:[%s2 + $0x10] sm:$0xff]
      %v411 = vld [vmem:[%s2 + $0x18] sm:$0xff]
      %v412 = vld [vmem:[%s2 + $0x20] sm:$0xff]
      %v413 = vld [vmem:[%s2 + $0x28] sm:$0xff]
      %v414 = vld [vmem:[%s2 + $0x30] sm:$0x3]
      %416 = vset.pattern.permute.xlu0 0
      %417 = vperm.xlu0 %416, %v408
      %v418 = vpop.permute.xlu0 %417
      %421 = vset.pattern.permute.xlu0 0
      %422 = vperm.xlu0 %421, %v409
      %v423 = vpop.permute.xlu0 %422
      %426 = vset.pattern.permute.xlu0 0
      %427 = vperm.xlu0 %426, %v410
      %v428 = vpop.permute.xlu0 %427
      %431 = vset.pattern.permute.xlu0 0
      %432 = vperm.xlu0 %431, %v411
      %v433 = vpop.permute.xlu0 %432
      %436 = vset.pattern.permute.xlu0 0
      %437 = vperm.xlu0 %436, %v412
      %v438 = vpop.permute.xlu0 %437
      %441 = vset.pattern.permute.xlu0 0
      %442 = vperm.xlu0 %441, %v413
      %v443 = vpop.permute.xlu0 %442
      %446 = vset.pattern.permute.xlu0 0
      %447 = vperm.xlu0 %446, %v414
      %v448 = vpop.permute.xlu0 %447
      %v451 = vlaneseq
      %v452 = vshrl.u32 %v451, 7
      %v453 = vsub.s32 0, %v452
      %v454 = vrot.slane %v406, %v453
      %v455 = vlaneseq
      %v456 = vshrl.u32 %v455, 7
      %v457 = vsub.s32 1, %v456
      %v458 = vrot.slane %v406, %v457
      %v459 = vlaneseq
      %v460 = vshrl.u32 %v459, 7
      %v461 = vsub.s32 2, %v460
      %v462 = vrot.slane %v406, %v461
      %v463 = vlaneseq
      %v464 = vshrl.u32 %v463, 7
      %v465 = vsub.s32 3, %v464
      %v466 = vrot.slane %v406, %v465
      %v471 = vmul.f32 %v418, %v454
      %v472 = vmul.f32 %v418, %v458
      %v473 = vmul.f32 %v418, %v462
      %v474 = vmul.f32 %v418, %v466
      %v475 = vmul.f32 %v423, %v454
      %v476 = vmul.f32 %v423, %v458
      %v477 = vmul.f32 %v423, %v462
      %v478 = vmul.f32 %v423, %v466
      %v479 = vmul.f32 %v428, %v454
      %v480 = vmul.f32 %v428, %v458
      %v481 = vmul.f32 %v428, %v462
      %v482 = vmul.f32 %v428, %v466
      %v483 = vmul.f32 %v433, %v454
      %v484 = vmul.f32 %v433, %v458
      %v485 = vmul.f32 %v433, %v462
      %v486 = vmul.f32 %v433, %v466
      %v487 = vmul.f32 %v438, %v454
      %v488 = vmul.f32 %v438, %v458
      %v489 = vmul.f32 %v438, %v462
      %v490 = vmul.f32 %v438, %v466
      %v491 = vmul.f32 %v443, %v454
      %v492 = vmul.f32 %v443, %v458
      %v493 = vmul.f32 %v443, %v462
      %v494 = vmul.f32 %v443, %v466
      %v495 = vmul.f32 %v448, %v454
      %v496 = vmul.f32 %v448, %v458
      %v497 = vmul.f32 %v448, %v462
      %v498 = vmul.f32 %v448, %v466
      %v499 = vld [vmem:[%s3] sm:$0xff]
      %v500 = vld [vmem:[%s3 + $0x8] sm:$0xff]
      %v501 = vld [vmem:[%s3 + $0x10] sm:$0xff]
      %v502 = vld [vmem:[%s3 + $0x18] sm:$0xff]
      %v503 = vld [vmem:[%s3 + $0x20] sm:$0xff]
      %v504 = vld [vmem:[%s3 + $0x28] sm:$0xff]
      %v505 = vld [vmem:[%s3 + $0x30] sm:$0x3]
      %507 = vset.pattern.permute.xlu0 0
      %508 = vperm.xlu0 %507, %v499
      %v509 = vpop.permute.xlu0 %508
      %512 = vset.pattern.permute.xlu0 0
      %513 = vperm.xlu0 %512, %v500
      %v514 = vpop.permute.xlu0 %513
      %517 = vset.pattern.permute.xlu0 0
      %518 = vperm.xlu0 %517, %v501
      %v519 = vpop.permute.xlu0 %518
      %522 = vset.pattern.permute.xlu0 0
      %523 = vperm.xlu0 %522, %v502
      %v524 = vpop.permute.xlu0 %523
      %527 = vset.pattern.permute.xlu0 0
      %528 = vperm.xlu0 %527, %v503
      %v529 = vpop.permute.xlu0 %528
      %532 = vset.pattern.permute.xlu0 0
      %533 = vperm.xlu0 %532, %v504
      %v534 = vpop.permute.xlu0 %533
      %537 = vset.pattern.permute.xlu0 0
      %538 = vperm.xlu0 %537, %v505
      %v539 = vpop.permute.xlu0 %538
      %v542 = vlaneseq
      %v543 = vshrl.u32 %v542, 7
      %v544 = vsub.s32 0, %v543
      %v545 = vrot.slane %v407, %v544
      %v546 = vlaneseq
      %v547 = vshrl.u32 %v546, 7
      %v548 = vsub.s32 1, %v547
      %v549 = vrot.slane %v407, %v548
      %v550 = vlaneseq
      %v551 = vshrl.u32 %v550, 7
      %v552 = vsub.s32 2, %v551
      %v553 = vrot.slane %v407, %v552
      %v554 = vlaneseq
      %v555 = vshrl.u32 %v554, 7
      %v556 = vsub.s32 3, %v555
      %v557 = vrot.slane %v407, %v556
      %v562 = vmul.f32 %v509, %v545
      %v563 = vmul.f32 %v509, %v549
      %v564 = vmul.f32 %v509, %v553
      %v565 = vmul.f32 %v509, %v557
      %v566 = vmul.f32 %v514, %v545
      %v567 = vmul.f32 %v514, %v549
      %v568 = vmul.f32 %v514, %v553
      %v569 = vmul.f32 %v514, %v557
      %v570 = vmul.f32 %v519, %v545
      %v571 = vmul.f32 %v519, %v549
      %v572 = vmul.f32 %v519, %v553
      %v573 = vmul.f32 %v519, %v557
      %v574 = vmul.f32 %v524, %v545
      %v575 = vmul.f32 %v524, %v549
      %v576 = vmul.f32 %v524, %v553
      %v577 = vmul.f32 %v524, %v557
      %v578 = vmul.f32 %v529, %v545
      %v579 = vmul.f32 %v529, %v549
      %v580 = vmul.f32 %v529, %v553
      %v581 = vmul.f32 %v529, %v557
      %v582 = vmul.f32 %v534, %v545
      %v583 = vmul.f32 %v534, %v549
      %v584 = vmul.f32 %v534, %v553
      %v585 = vmul.f32 %v534, %v557
      %v586 = vmul.f32 %v539, %v545
      %v587 = vmul.f32 %v539, %v549
      %v588 = vmul.f32 %v539, %v553
      %v589 = vmul.f32 %v539, %v557
      %v590 = vadd.f32 %v471, %v562
      %v591 = vadd.f32 %v472, %v563
      %v592 = vadd.f32 %v473, %v564
      %v593 = vadd.f32 %v474, %v565
      %v594 = vadd.f32 %v475, %v566
      %v595 = vadd.f32 %v476, %v567
      %v596 = vadd.f32 %v477, %v568
      %v597 = vadd.f32 %v478, %v569
      %v598 = vadd.f32 %v479, %v570
      %v599 = vadd.f32 %v480, %v571
      %v600 = vadd.f32 %v481, %v572
      %v601 = vadd.f32 %v482, %v573
      %v602 = vadd.f32 %v483, %v574
      %v603 = vadd.f32 %v484, %v575
      %v604 = vadd.f32 %v485, %v576
      %v605 = vadd.f32 %v486, %v577
      %v606 = vadd.f32 %v487, %v578
      %v607 = vadd.f32 %v488, %v579
      %v608 = vadd.f32 %v489, %v580
      %v609 = vadd.f32 %v490, %v581
      %v610 = vadd.f32 %v491, %v582
      %v611 = vadd.f32 %v492, %v583
      %v612 = vadd.f32 %v493, %v584
      %v613 = vadd.f32 %v494, %v585
      %v614 = vadd.f32 %v495, %v586
      %v615 = vadd.f32 %v496, %v587
      %v616 = vadd.f32 %v497, %v588
      %v617 = vadd.f32 %v498, %v589
      %v618 = vld [vmem:[%s4] sm:$0xff]
      %v619 = vld [vmem:[%s4 + $0x8] sm:$0xff]
      %v620 = vld [vmem:[%s4 + $0x10] sm:$0xff]
      %v621 = vld [vmem:[%s4 + $0x18] sm:$0xff]
      %v622 = vld [vmem:[%s4 + $0x20] sm:$0xff]
      %v623 = vld [vmem:[%s4 + $0x28] sm:$0xff]
      %v624 = vld [vmem:[%s4 + $0x30] sm:$0x3]
      %626 = vset.pattern.permute.xlu0 0
      %627 = vperm.xlu0 %626, %v618
      %v628 = vpop.permute.xlu0 %627
      %631 = vset.pattern.permute.xlu0 0
      %632 = vperm.xlu0 %631, %v619
      %v633 = vpop.permute.xlu0 %632
      %636 = vset.pattern.permute.xlu0 0
      %637 = vperm.xlu0 %636, %v620
      %v638 = vpop.permute.xlu0 %637
      %641 = vset.pattern.permute.xlu0 0
      %642 = vperm.xlu0 %641, %v621
      %v643 = vpop.permute.xlu0 %642
      %646 = vset.pattern.permute.xlu0 0
      %647 = vperm.xlu0 %646, %v622
      %v648 = vpop.permute.xlu0 %647
      %651 = vset.pattern.permute.xlu0 0
      %652 = vperm.xlu0 %651, %v623
      %v653 = vpop.permute.xlu0 %652
      %656 = vset.pattern.permute.xlu0 0
      %657 = vperm.xlu0 %656, %v624
      %v658 = vpop.permute.xlu0 %657
      %v660 = vadd.f32 %v590, %v628
      %v661 = vadd.f32 %v591, %v628
      %v662 = vadd.f32 %v592, %v628
      %v663 = vadd.f32 %v593, %v628
      %v664 = vadd.f32 %v594, %v633
      %v665 = vadd.f32 %v595, %v633
      %v666 = vadd.f32 %v596, %v633
      %v667 = vadd.f32 %v597, %v633
      %v668 = vadd.f32 %v598, %v638
      %v669 = vadd.f32 %v599, %v638
      %v670 = vadd.f32 %v600, %v638
      %v671 = vadd.f32 %v601, %v638
      %v672 = vadd.f32 %v602, %v643
      %v673 = vadd.f32 %v603, %v643
      %v674 = vadd.f32 %v604, %v643
      %v675 = vadd.f32 %v605, %v643
      %v676 = vadd.f32 %v606, %v648
      %v677 = vadd.f32 %v607, %v648
      %v678 = vadd.f32 %v608, %v648
      %v679 = vadd.f32 %v609, %v648
      %v680 = vadd.f32 %v610, %v653
      %v681 = vadd.f32 %v611, %v653
      %v682 = vadd.f32 %v612, %v653
      %v683 = vadd.f32 %v613, %v653
      %v684 = vadd.f32 %v614, %v658
      %v685 = vadd.f32 %v615, %v658
      %v686 = vadd.f32 %v616, %v658
      %v687 = vadd.f32 %v617, %v658
      %v688 = vtanh.pop %v660
      %v689 = vtanh.pop %v661
      %v690 = vtanh.pop %v662
      %v691 = vtanh.pop %v663
      %v692 = vtanh.pop %v664
      %v693 = vtanh.pop %v665
      %v694 = vtanh.pop %v666
      %v695 = vtanh.pop %v667
      %v696 = vtanh.pop %v668
      %v697 = vtanh.pop %v669
      %v698 = vtanh.pop %v670
      %v699 = vtanh.pop %v671
      %v700 = vtanh.pop %v672
      %v701 = vtanh.pop %v673
      %v702 = vtanh.pop %v674
      %v703 = vtanh.pop %v675
      %v704 = vtanh.pop %v676
      %v705 = vtanh.pop %v677
      %v706 = vtanh.pop %v678
      %v707 = vtanh.pop %v679
      %v708 = vtanh.pop %v680
      %v709 = vtanh.pop %v681
      %v710 = vtanh.pop %v682
      %v711 = vtanh.pop %v683
      %v712 = vtanh.pop %v684
      %v713 = vtanh.pop %v685
      %v714 = vtanh.pop %v686
      %v715 = vtanh.pop %v687
      %v716 = vld [vmem:[%s5] sm:$0xff]
      %v717 = vld [vmem:[%s5 + $0x8] sm:$0xff]
      %v718 = vld [vmem:[%s5 + $0x10] sm:$0xff]
      %v719 = vld [vmem:[%s5 + $0x18] sm:$0xff]
      %v720 = vld [vmem:[%s5 + $0x20] sm:$0xff]
      %v721 = vld [vmem:[%s5 + $0x28] sm:$0xff]
      %v722 = vld [vmem:[%s5 + $0x30] sm:$0x3]
      %v723 = vld [vmem:[%s6] sm:$0xff]
      %v724 = vld [vmem:[%s6 + $0x8] sm:$0xff]
      %v725 = vld [vmem:[%s6 + $0x10] sm:$0xff]
      %v726 = vld [vmem:[%s6 + $0x18] sm:$0xff]
      %v727 = vld [vmem:[%s6 + $0x20] sm:$0xff]
      %v728 = vld [vmem:[%s6 + $0x28] sm:$0xff]
      %v729 = vld [vmem:[%s6 + $0x30] sm:$0x3]
      %731 = vset.pattern.permute.xlu0 0
      %732 = vperm.xlu0 %731, %v723
      %v733 = vpop.permute.xlu0 %732
      %736 = vset.pattern.permute.xlu0 0
      %737 = vperm.xlu0 %736, %v724
      %v738 = vpop.permute.xlu0 %737
      %741 = vset.pattern.permute.xlu0 0
      %742 = vperm.xlu0 %741, %v725
      %v743 = vpop.permute.xlu0 %742
      %746 = vset.pattern.permute.xlu0 0
      %747 = vperm.xlu0 %746, %v726
      %v748 = vpop.permute.xlu0 %747
      %751 = vset.pattern.permute.xlu0 0
      %752 = vperm.xlu0 %751, %v727
      %v753 = vpop.permute.xlu0 %752
      %756 = vset.pattern.permute.xlu0 0
      %757 = vperm.xlu0 %756, %v728
      %v758 = vpop.permute.xlu0 %757
      %761 = vset.pattern.permute.xlu0 0
      %762 = vperm.xlu0 %761, %v729
      %v763 = vpop.permute.xlu0 %762
      %vm765 = vcmask 408576
      %v767 = vsel %vm765, %v716, 0
      %v770 = vsel %vm765, %v717, 0
      %v773 = vsel %vm765, %v718, 0
      %v776 = vsel %vm765, %v719, 0
      %v779 = vsel %vm765, %v720, 0
      %v782 = vsel %vm765, %v721, 0
      %v785 = vsel %vm765, %v722, 0
      %vm787 = vcmask 1041408
      %v789 = vsel %vm787, %v712, 0
      %v792 = vsel %vm787, %v713, 0
      %v795 = vsel %vm787, %v714, 0
      %v798 = vsel %vm787, %v715, 0
      %800 = vmatprep.subr.mxu0 %v689
      %801 = vmatpush1.msra.mxu0 %v688
      %802 = vmatprep.subr.mxu0 %v693
      %803 = vmatpush1.msra.mxu0 %v692
      %804 = vmatprep.subr.mxu0 %v697
      %805 = vmatpush1.msra.mxu0 %v696
      %806 = vmatprep.subr.mxu0 %v701
      %807 = vmatpush1.msra.mxu0 %v700
      %808 = vmatprep.subr.mxu0 %v705
      %809 = vmatpush1.msra.mxu0 %v704
      %810 = vmatprep.subr.mxu0 %v709
      %811 = vmatpush1.msra.mxu0 %v708
      %812 = vmatprep.subr.mxu0 %v792
      %813 = vmatpush1.msra.mxu0 %v789
      %814 = vmatprep.subr.mxu0 0.0
      %815 = vmatpush1.msra.mxu0 0.0
      %816 = vmatprep.subr.mxu0 0.0
      %817 = vmatpush1.msra.mxu0 0.0
      %818 = vmatprep.subr.mxu0 0.0
      %819 = vmatpush1.msra.mxu0 0.0
      %820 = vmatprep.subr.mxu0 0.0
      %821 = vmatpush1.msra.mxu0 0.0
      %822 = vmatprep.subr.mxu0 0.0
      %823 = vmatpush1.msra.mxu0 0.0
      %824 = vmatprep.subr.mxu0 0.0
      %825 = vmatpush1.msra.mxu0 0.0
      %826 = vmatprep.subr.mxu0 0.0
      %827 = vmatpush1.msra.mxu0 0.0
      %828 = vmatprep.subr.mxu0 0.0
      %829 = vmatpush1.msra.mxu0 0.0
      %830 = vmatprep.subr.mxu0 0.0
      %831 = vmatpush1.msra.mxu0 0.0
      %832 = vmatprep.subr.mxu0 0.0
      %833 = vmatpush1.msra.mxu0 0.0
      %834 = vmatprep.subr.mxu0 0.0
      %835 = vmatpush1.msra.mxu0 0.0
      %836 = vmatprep.subr.mxu0 0.0
      %837 = vmatpush1.msra.mxu0 0.0
      %838 = vmatprep.subr.mxu0 0.0
      %839 = vmatpush1.msra.mxu0 0.0
      %840 = vmatprep.subr.mxu0 0.0
      %841 = vmatpush1.msra.mxu0 0.0
      %842 = vmatprep.subr.mxu0 0.0
      %843 = vmatpush1.msra.mxu0 0.0
      %844 = vmatprep.subr.mxu0 0.0
      %845 = vmatpush1.msra.mxu0 0.0
      %846 = vmatprep.subr.mxu0 0.0
      %847 = vmatpush1.msra.mxu0 0.0
      %848 = vmatprep.subr.mxu0 0.0
      %849 = vmatpush1.msra.mxu0 0.0
      %850 = vmatprep.subr.mxu0 0.0
      %851 = vmatpush1.msra.mxu0 0.0
      %852 = vmatprep.subr.mxu0 0.0
      %853 = vmatpush1.msra.mxu0 0.0
      %854 = vmatprep.subr.mxu0 0.0
      %855 = vmatpush1.msra.mxu0 0.0
      %856 = vmatprep.subr.mxu0 0.0
      %857 = vmatpush1.msra.mxu0 0.0
      %858 = vmatprep.subr.mxu0 0.0
      %859 = vmatpush1.msra.mxu0 0.0
      %860 = vmatprep.subr.mxu0 0.0
      %861 = vmatpush1.msra.mxu0 0.0
      %862 = vmatprep.subr.mxu0 0.0
      %863 = vmatpush1.msra.mxu0 0.0
      %864 = vmatprep.mubr.f32.mxu0 0.0
      %865 = vmatmul.mubr.f32.gmra.mrb[0].mxu0 %v767
      %v866 = vpop.f32.mrb[0].mxu0
      %v867 = vadd.f32 %v733, %v866
      %v868 = vpop.f32.mrb[0].mxu0
      %v869 = vadd.f32 %v733, %v868
      %870 = vmatprep.mubr.f32.mxu0 0.0
      %871 = vmatmul.mubr.f32.gmra.mrb[0].mxu0 %v770
      %v872 = vpop.f32.mrb[0].mxu0
      %v873 = vadd.f32 %v738, %v872
      %v874 = vpop.f32.mrb[0].mxu0
      %v875 = vadd.f32 %v738, %v874
      %876 = vmatprep.mubr.f32.mxu0 0.0
      %877 = vmatmul.mubr.f32.gmra.mrb[0].mxu0 %v773
      %v878 = vpop.f32.mrb[0].mxu0
      %v879 = vadd.f32 %v743, %v878
      %v880 = vpop.f32.mrb[0].mxu0
      %v881 = vadd.f32 %v743, %v880
      %882 = vmatprep.mubr.f32.mxu0 0.0
      %883 = vmatmul.mubr.f32.gmra.mrb[0].mxu0 %v776
      %v884 = vpop.f32.mrb[0].mxu0
      %v885 = vadd.f32 %v748, %v884
      %v886 = vpop.f32.mrb[0].mxu0
      %v887 = vadd.f32 %v748, %v886
      %888 = vmatprep.mubr.f32.mxu0 0.0
      %889 = vmatmul.mubr.f32.gmra.mrb[0].mxu0 %v779
      %v890 = vpop.f32.mrb[0].mxu0
      %v891 = vadd.f32 %v753, %v890
      %v892 = vpop.f32.mrb[0].mxu0
      %v893 = vadd.f32 %v753, %v892
      %894 = vmatprep.mubr.f32.mxu0 0.0
      %895 = vmatmul.mubr.f32.gmra.mrb[0].mxu0 %v782
      %v896 = vpop.f32.mrb[0].mxu0
      %v897 = vadd.f32 %v758, %v896
      %v898 = vpop.f32.mrb[0].mxu0
      %v899 = vadd.f32 %v758, %v898
      %900 = vmatprep.mubr.f32.mxu0 0.0
      %901 = vmatmul.mubr.f32.gmra.mrb[0].mxu0 %v785
      %v902 = vpop.f32.mrb[0].mxu0
      %v903 = vadd.f32 %v763, %v902
      %v904 = vpop.f32.mrb[0].mxu0
      %v905 = vadd.f32 %v763, %v904
      %906 = vdwg.mxu0
      %907 = vmatprep.subr.mxu0 %v691
      %908 = vmatpush1.msra.mxu0 %v690
      %909 = vmatprep.subr.mxu0 %v695
      %910 = vmatpush1.msra.mxu0 %v694
      %911 = vmatprep.subr.mxu0 %v699
      %912 = vmatpush1.msra.mxu0 %v698
      %913 = vmatprep.subr.mxu0 %v703
      %914 = vmatpush1.msra.mxu0 %v702
      %915 = vmatprep.subr.mxu0 %v707
      %916 = vmatpush1.msra.mxu0 %v706
      %917 = vmatprep.subr.mxu0 %v711
      %918 = vmatpush1.msra.mxu0 %v710
      %919 = vmatprep.subr.mxu0 %v798
      %920 = vmatpush1.msra.mxu0 %v795
      %921 = vmatprep.subr.mxu0 0.0
      %922 = vmatpush1.msra.mxu0 0.0
      %923 = vmatprep.subr.mxu0 0.0
      %924 = vmatpush1.msra.mxu0 0.0
      %925 = vmatprep.subr.mxu0 0.0
      %926 = vmatpush1.msra.mxu0 0.0
      %927 = vmatprep.subr.mxu0 0.0
      %928 = vmatpush1.msra.mxu0 0.0
      %929 = vmatprep.subr.mxu0 0.0
      %930 = vmatpush1.msra.mxu0 0.0
      %931 = vmatprep.subr.mxu0 0.0
      %932 = vmatpush1.msra.mxu0 0.0
      %933 = vmatprep.subr.mxu0 0.0
      %934 = vmatpush1.msra.mxu0 0.0
      %935 = vmatprep.subr.mxu0 0.0
      %936 = vmatpush1.msra.mxu0 0.0
      %937 = vmatprep.subr.mxu0 0.0
      %938 = vmatpush1.msra.mxu0 0.0
      %939 = vmatprep.subr.mxu0 0.0
      %940 = vmatpush1.msra.mxu0 0.0
      %941 = vmatprep.subr.mxu0 0.0
      %942 = vmatpush1.msra.mxu0 0.0
      %943 = vmatprep.subr.mxu0 0.0
      %944 = vmatpush1.msra.mxu0 0.0
      %945 = vmatprep.subr.mxu0 0.0
      %946 = vmatpush1.msra.mxu0 0.0
      %947 = vmatprep.subr.mxu0 0.0
      %948 = vmatpush1.msra.mxu0 0.0
      %949 = vmatprep.subr.mxu0 0.0
      %950 = vmatpush1.msra.mxu0 0.0
      %951 = vmatprep.subr.mxu0 0.0
      %952 = vmatpush1.msra.mxu0 0.0
      %953 = vmatprep.subr.mxu0 0.0
      %954 = vmatpush1.msra.mxu0 0.0
      %955 = vmatprep.subr.mxu0 0.0
      %956 = vmatpush1.msra.mxu0 0.0
      %957 = vmatprep.subr.mxu0 0.0
      %958 = vmatpush1.msra.mxu0 0.0
      %959 = vmatprep.subr.mxu0 0.0
      %960 = vmatpush1.msra.mxu0 0.0
      %961 = vmatprep.subr.mxu0 0.0
      %962 = vmatpush1.msra.mxu0 0.0
      %963 = vmatprep.subr.mxu0 0.0
      %964 = vmatpush1.msra.mxu0 0.0
      %965 = vmatprep.subr.mxu0 0.0
      %966 = vmatpush1.msra.mxu0 0.0
      %967 = vmatprep.subr.mxu0 0.0
      %968 = vmatpush1.msra.mxu0 0.0
      %969 = vmatprep.subr.mxu0 0.0
      %970 = vmatpush1.msra.mxu0 0.0
      %971 = vmatprep.mubr.f32.mxu0 0.0
      %972 = vmatmul.mubr.f32.gmra.mrb[0].mxu0 %v767
      %v973 = vpop.f32.mrb[0].mxu0
      %v974 = vadd.f32 %v733, %v973
      %v975 = vpop.f32.mrb[0].mxu0
      %v976 = vadd.f32 %v733, %v975
      %977 = vmatprep.mubr.f32.mxu0 0.0
      %978 = vmatmul.mubr.f32.gmra.mrb[0].mxu0 %v770
      %v979 = vpop.f32.mrb[0].mxu0
      %v980 = vadd.f32 %v738, %v979
      %v981 = vpop.f32.mrb[0].mxu0
      %v982 = vadd.f32 %v738, %v981
      %983 = vmatprep.mubr.f32.mxu0 0.0
      %984 = vmatmul.mubr.f32.gmra.mrb[0].mxu0 %v773
      %v985 = vpop.f32.mrb[0].mxu0
      %v986 = vadd.f32 %v743, %v985
      %v987 = vpop.f32.mrb[0].mxu0
      %v988 = vadd.f32 %v743, %v987
      %989 = vmatprep.mubr.f32.mxu0 0.0
      %990 = vmatmul.mubr.f32.gmra.mrb[0].mxu0 %v776
      %v991 = vpop.f32.mrb[0].mxu0
      %v992 = vadd.f32 %v748, %v991
      %v993 = vpop.f32.mrb[0].mxu0
      %v994 = vadd.f32 %v748, %v993
      %995 = vmatprep.mubr.f32.mxu0 0.0
      %996 = vmatmul.mubr.f32.gmra.mrb[0].mxu0 %v779
      %v997 = vpop.f32.mrb[0].mxu0
      %v998 = vadd.f32 %v753, %v997
      %v999 = vpop.f32.mrb[0].mxu0
      %v1000 = vadd.f32 %v753, %v999
      %1001 = vmatprep.mubr.f32.mxu0 0.0
      %1002 = vmatmul.mubr.f32.gmra.mrb[0].mxu0 %v782
      %v1003 = vpop.f32.mrb[0].mxu0
      %v1004 = vadd.f32 %v758, %v1003
      %v1005 = vpop.f32.mrb[0].mxu0
      %v1006 = vadd.f32 %v758, %v1005
      %1007 = vmatprep.mubr.f32.mxu0 0.0
      %1008 = vmatmul.mubr.f32.gmra.mrb[0].mxu0 %v785
      %v1009 = vpop.f32.mrb[0].mxu0
      %v1010 = vadd.f32 %v763, %v1009
      %v1011 = vpop.f32.mrb[0].mxu0
      %v1012 = vadd.f32 %v763, %v1011
      %1013 = vdwg.mxu0
      %v1014 = vtanh.pop %v867
      %v1015 = vtanh.pop %v869
      %v1016 = vtanh.pop %v974
      %v1017 = vtanh.pop %v976
      %v1018 = vtanh.pop %v873
      %v1019 = vtanh.pop %v875
      %v1020 = vtanh.pop %v980
      %v1021 = vtanh.pop %v982
      %v1022 = vtanh.pop %v879
      %v1023 = vtanh.pop %v881
      %v1024 = vtanh.pop %v986
      %v1025 = vtanh.pop %v988
      %v1026 = vtanh.pop %v885
      %v1027 = vtanh.pop %v887
      %v1028 = vtanh.pop %v992
      %v1029 = vtanh.pop %v994
      %v1030 = vtanh.pop %v891
      %v1031 = vtanh.pop %v893
      %v1032 = vtanh.pop %v998
      %v1033 = vtanh.pop %v1000
      %v1034 = vtanh.pop %v897
      %v1035 = vtanh.pop %v899
      %v1036 = vtanh.pop %v1004
      %v1037 = vtanh.pop %v1006
      %v1038 = vtanh.pop %v903
      %v1039 = vtanh.pop %v905
      %v1040 = vtanh.pop %v1010
      %v1041 = vtanh.pop %v1012
      %v1042 = vld [vmem:[%s7] sm:$0xff]
      %v1043 = vld [vmem:[%s7 + $0x8] sm:$0xff]
      %v1044 = vld [vmem:[%s7 + $0x10] sm:$0xff]
      %v1045 = vld [vmem:[%s7 + $0x18] sm:$0xff]
      %v1046 = vld [vmem:[%s7 + $0x20] sm:$0xff]
      %v1047 = vld [vmem:[%s7 + $0x28] sm:$0xff]
      %v1048 = vld [vmem:[%s7 + $0x30] sm:$0x3]
      %v1049 = vld [vmem:[%s8] sm:$0xff]
      %v1050 = vld [vmem:[%s8 + $0x8] sm:$0xff]
      %v1051 = vld [vmem:[%s8 + $0x10] sm:$0xff]
      %v1052 = vld [vmem:[%s8 + $0x18] sm:$0xff]
      %v1053 = vld [vmem:[%s8 + $0x20] sm:$0xff]
      %v1054 = vld [vmem:[%s8 + $0x28] sm:$0xff]
      %v1055 = vld [vmem:[%s8 + $0x30] sm:$0x3]
      %1057 = vset.pattern.permute.xlu0 0
      %1058 = vperm.xlu0 %1057, %v1049
      %v1059 = vpop.permute.xlu0 %1058
      %1062 = vset.pattern.permute.xlu0 0
      %1063 = vperm.xlu0 %1062, %v1050
      %v1064 = vpop.permute.xlu0 %1063
      %1067 = vset.pattern.permute.xlu0 0
      %1068 = vperm.xlu0 %1067, %v1051
      %v1069 = vpop.permute.xlu0 %1068
      %1072 = vset.pattern.permute.xlu0 0
      %1073 = vperm.xlu0 %1072, %v1052
      %v1074 = vpop.permute.xlu0 %1073
      %1077 = vset.pattern.permute.xlu0 0
      %1078 = vperm.xlu0 %1077, %v1053
      %v1079 = vpop.permute.xlu0 %1078
      %1082 = vset.pattern.permute.xlu0 0
      %1083 = vperm.xlu0 %1082, %v1054
      %v1084 = vpop.permute.xlu0 %1083
      %1087 = vset.pattern.permute.xlu0 0
      %1088 = vperm.xlu0 %1087, %v1055
      %v1089 = vpop.permute.xlu0 %1088
      %v1092 = vsel %vm765, %v1042, 0
      %v1095 = vsel %vm765, %v1043, 0
      %v1098 = vsel %vm765, %v1044, 0
      %v1101 = vsel %vm765, %v1045, 0
      %v1104 = vsel %vm765, %v1046, 0
      %v1107 = vsel %vm765, %v1047, 0
      %v1110 = vsel %vm765, %v1048, 0
      %v1113 = vsel %vm787, %v1038, 0
      %v1116 = vsel %vm787, %v1039, 0
      %v1119 = vsel %vm787, %v1040, 0
      %v1122 = vsel %vm787, %v1041, 0
      %1124 = vmatprep.subr.mxu0 %v1015
      %1125 = vmatpush1.msra.mxu0 %v1014
      %1126 = vmatprep.subr.mxu0 %v1019
      %1127 = vmatpush1.msra.mxu0 %v1018
      %1128 = vmatprep.subr.mxu0 %v1023
      %1129 = vmatpush1.msra.mxu0 %v1022
      %1130 = vmatprep.subr.mxu0 %v1027
      %1131 = vmatpush1.msra.mxu0 %v1026
      %1132 = vmatprep.subr.mxu0 %v1031
      %1133 = vmatpush1.msra.mxu0 %v1030
      %1134 = vmatprep.subr.mxu0 %v1035
      %1135 = vmatpush1.msra.mxu0 %v1034
      %1136 = vmatprep.subr.mxu0 %v1116
      %1137 = vmatpush1.msra.mxu0 %v1113
      %1138 = vmatprep.subr.mxu0 0.0
      %1139 = vmatpush1.msra.mxu0 0.0
      %1140 = vmatprep.subr.mxu0 0.0
      %1141 = vmatpush1.msra.mxu0 0.0
      %1142 = vmatprep.subr.mxu0 0.0
      %1143 = vmatpush1.msra.mxu0 0.0
      %1144 = vmatprep.subr.mxu0 0.0
      %1145 = vmatpush1.msra.mxu0 0.0
      %1146 = vmatprep.subr.mxu0 0.0
      %1147 = vmatpush1.msra.mxu0 0.0
      %1148 = vmatprep.subr.mxu0 0.0
      %1149 = vmatpush1.msra.mxu0 0.0
      %1150 = vmatprep.subr.mxu0 0.0
      %1151 = vmatpush1.msra.mxu0 0.0
      %1152 = vmatprep.subr.mxu0 0.0
      %1153 = vmatpush1.msra.mxu0 0.0
      %1154 = vmatprep.subr.mxu0 0.0
      %1155 = vmatpush1.msra.mxu0 0.0
      %1156 = vmatprep.subr.mxu0 0.0
      %1157 = vmatpush1.msra.mxu0 0.0
      %1158 = vmatprep.subr.mxu0 0.0
      %1159 = vmatpush1.msra.mxu0 0.0
      %1160 = vmatprep.subr.mxu0 0.0
      %1161 = vmatpush1.msra.mxu0 0.0
      %1162 = vmatprep.subr.mxu0 0.0
      %1163 = vmatpush1.msra.mxu0 0.0
      %1164 = vmatprep.subr.mxu0 0.0
      %1165 = vmatpush1.msra.mxu0 0.0
      %1166 = vmatprep.subr.mxu0 0.0
      %1167 = vmatpush1.msra.mxu0 0.0
      %1168 = vmatprep.subr.mxu0 0.0
      %1169 = vmatpush1.msra.mxu0 0.0
      %1170 = vmatprep.subr.mxu0 0.0
      %1171 = vmatpush1.msra.mxu0 0.0
      %1172 = vmatprep.subr.mxu0 0.0
      %1173 = vmatpush1.msra.mxu0 0.0
      %1174 = vmatprep.subr.mxu0 0.0
      %1175 = vmatpush1.msra.mxu0 0.0
      %1176 = vmatprep.subr.mxu0 0.0
      %1177 = vmatpush1.msra.mxu0 0.0
      %1178 = vmatprep.subr.mxu0 0.0
      %1179 = vmatpush1.msra.mxu0 0.0
      %1180 = vmatprep.subr.mxu0 0.0
      %1181 = vmatpush1.msra.mxu0 0.0
      %1182 = vmatprep.subr.mxu0 0.0
      %1183 = vmatpush1.msra.mxu0 0.0
      %1184 = vmatprep.subr.mxu0 0.0
      %1185 = vmatpush1.msra.mxu0 0.0
      %1186 = vmatprep.subr.mxu0 0.0
      %1187 = vmatpush1.msra.mxu0 0.0
      %1188 = vmatprep.mubr.f32.mxu0 0.0
      %1189 = vmatmul.mubr.f32.gmra.mrb[0].mxu0 %v1092
      %v1190 = vpop.f32.mrb[0].mxu0
      %v1191 = vadd.f32 %v1059, %v1190
      %v1192 = vpop.f32.mrb[0].mxu0
      %v1193 = vadd.f32 %v1059, %v1192
      %1194 = vmatprep.mubr.f32.mxu0 0.0
      %1195 = vmatmul.mubr.f32.gmra.mrb[0].mxu0 %v1095
      %v1196 = vpop.f32.mrb[0].mxu0
      %v1197 = vadd.f32 %v1064, %v1196
      %v1198 = vpop.f32.mrb[0].mxu0
      %v1199 = vadd.f32 %v1064, %v1198
      %1200 = vmatprep.mubr.f32.mxu0 0.0
      %1201 = vmatmul.mubr.f32.gmra.mrb[0].mxu0 %v1098
      %v1202 = vpop.f32.mrb[0].mxu0
      %v1203 = vadd.f32 %v1069, %v1202
      %v1204 = vpop.f32.mrb[0].mxu0
      %v1205 = vadd.f32 %v1069, %v1204
      %1206 = vmatprep.mubr.f32.mxu0 0.0
      %1207 = vmatmul.mubr.f32.gmra.mrb[0].mxu0 %v1101
      %v1208 = vpop.f32.mrb[0].mxu0
      %v1209 = vadd.f32 %v1074, %v1208
      %v1210 = vpop.f32.mrb[0].mxu0
      %v1211 = vadd.f32 %v1074, %v1210
      %1212 = vmatprep.mubr.f32.mxu0 0.0
      %1213 = vmatmul.mubr.f32.gmra.mrb[0].mxu0 %v1104
      %v1214 = vpop.f32.mrb[0].mxu0
      %v1215 = vadd.f32 %v1079, %v1214
      %v1216 = vpop.f32.mrb[0].mxu0
      %v1217 = vadd.f32 %v1079, %v1216
      %1218 = vmatprep.mubr.f32.mxu0 0.0
      %1219 = vmatmul.mubr.f32.gmra.mrb[0].mxu0 %v1107
      %v1220 = vpop.f32.mrb[0].mxu0
      %v1221 = vadd.f32 %v1084, %v1220
      %v1222 = vpop.f32.mrb[0].mxu0
      %v1223 = vadd.f32 %v1084, %v1222
      %1224 = vmatprep.mubr.f32.mxu0 0.0
      %1225 = vmatmul.mubr.f32.gmra.mrb[0].mxu0 %v1110
      %v1226 = vpop.f32.mrb[0].mxu0
      %v1227 = vadd.f32 %v1089, %v1226
      %v1228 = vpop.f32.mrb[0].mxu0
      %v1229 = vadd.f32 %v1089, %v1228
      %1230 = vdwg.mxu0
      %1231 = vmatprep.subr.mxu0 %v1017
      %1232 = vmatpush1.msra.mxu0 %v1016
      %1233 = vmatprep.subr.mxu0 %v1021
      %1234 = vmatpush1.msra.mxu0 %v1020
      %1235 = vmatprep.subr.mxu0 %v1025
      %1236 = vmatpush1.msra.mxu0 %v1024
      %1237 = vmatprep.subr.mxu0 %v1029
      %1238 = vmatpush1.msra.mxu0 %v1028
      %1239 = vmatprep.subr.mxu0 %v1033
      %1240 = vmatpush1.msra.mxu0 %v1032
      %1241 = vmatprep.subr.mxu0 %v1037
      %1242 = vmatpush1.msra.mxu0 %v1036
      %1243 = vmatprep.subr.mxu0 %v1122
      %1244 = vmatpush1.msra.mxu0 %v1119
      %1245 = vmatprep.subr.mxu0 0.0
      %1246 = vmatpush1.msra.mxu0 0.0
      %1247 = vmatprep.subr.mxu0 0.0
      %1248 = vmatpush1.msra.mxu0 0.0
      %1249 = vmatprep.subr.mxu0 0.0
      %1250 = vmatpush1.msra.mxu0 0.0
      %1251 = vmatprep.subr.mxu0 0.0
      %1252 = vmatpush1.msra.mxu0 0.0
      %1253 = vmatprep.subr.mxu0 0.0
      %1254 = vmatpush1.msra.mxu0 0.0
      %1255 = vmatprep.subr.mxu0 0.0
      %1256 = vmatpush1.msra.mxu0 0.0
      %1257 = vmatprep.subr.mxu0 0.0
      %1258 = vmatpush1.msra.mxu0 0.0
      %1259 = vmatprep.subr.mxu0 0.0
      %1260 = vmatpush1.msra.mxu0 0.0
      %1261 = vmatprep.subr.mxu0 0.0
      %1262 = vmatpush1.msra.mxu0 0.0
      %1263 = vmatprep.subr.mxu0 0.0
      %1264 = vmatpush1.msra.mxu0 0.0
      %1265 = vmatprep.subr.mxu0 0.0
      %1266 = vmatpush1.msra.mxu0 0.0
      %1267 = vmatprep.subr.mxu0 0.0
      %1268 = vmatpush1.msra.mxu0 0.0
      %1269 = vmatprep.subr.mxu0 0.0
      %1270 = vmatpush1.msra.mxu0 0.0
      %1271 = vmatprep.subr.mxu0 0.0
      %1272 = vmatpush1.msra.mxu0 0.0
      %1273 = vmatprep.subr.mxu0 0.0
      %1274 = vmatpush1.msra.mxu0 0.0
      %1275 = vmatprep.subr.mxu0 0.0
      %1276 = vmatpush1.msra.mxu0 0.0
      %1277 = vmatprep.subr.mxu0 0.0
      %1278 = vmatpush1.msra.mxu0 0.0
      %1279 = vmatprep.subr.mxu0 0.0
      %1280 = vmatpush1.msra.mxu0 0.0
      %1281 = vmatprep.subr.mxu0 0.0
      %1282 = vmatpush1.msra.mxu0 0.0
      %1283 = vmatprep.subr.mxu0 0.0
      %1284 = vmatpush1.msra.mxu0 0.0
      %1285 = vmatprep.subr.mxu0 0.0
      %1286 = vmatpush1.msra.mxu0 0.0
      %1287 = vmatprep.subr.mxu0 0.0
      %1288 = vmatpush1.msra.mxu0 0.0
      %1289 = vmatprep.subr.mxu0 0.0
      %1290 = vmatpush1.msra.mxu0 0.0
      %1291 = vmatprep.subr.mxu0 0.0
      %1292 = vmatpush1.msra.mxu0 0.0
      %1293 = vmatprep.subr.mxu0 0.0
      %1294 = vmatpush1.msra.mxu0 0.0
      %1295 = vmatprep.mubr.f32.mxu0 0.0
      %1296 = vmatmul.mubr.f32.gmra.mrb[0].mxu0 %v1092
      %v1297 = vpop.f32.mrb[0].mxu0
      %v1298 = vadd.f32 %v1059, %v1297
      %v1299 = vpop.f32.mrb[0].mxu0
      %v1300 = vadd.f32 %v1059, %v1299
      %1301 = vmatprep.mubr.f32.mxu0 0.0
      %1302 = vmatmul.mubr.f32.gmra.mrb[0].mxu0 %v1095
      %v1303 = vpop.f32.mrb[0].mxu0
      %v1304 = vadd.f32 %v1064, %v1303
      %v1305 = vpop.f32.mrb[0].mxu0
      %v1306 = vadd.f32 %v1064, %v1305
      %1307 = vmatprep.mubr.f32.mxu0 0.0
      %1308 = vmatmul.mubr.f32.gmra.mrb[0].mxu0 %v1098
      %v1309 = vpop.f32.mrb[0].mxu0
      %v1310 = vadd.f32 %v1069, %v1309
      %v1311 = vpop.f32.mrb[0].mxu0
      %v1312 = vadd.f32 %v1069, %v1311
      %1313 = vmatprep.mubr.f32.mxu0 0.0
      %1314 = vmatmul.mubr.f32.gmra.mrb[0].mxu0 %v1101
      %v1315 = vpop.f32.mrb[0].mxu0
      %v1316 = vadd.f32 %v1074, %v1315
      %v1317 = vpop.f32.mrb[0].mxu0
      %v1318 = vadd.f32 %v1074, %v1317
      %1319 = vmatprep.mubr.f32.mxu0 0.0
      %1320 = vmatmul.mubr.f32.gmra.mrb[0].mxu0 %v1104
      %v1321 = vpop.f32.mrb[0].mxu0
      %v1322 = vadd.f32 %v1079, %v1321
      %v1323 = vpop.f32.mrb[0].mxu0
      %v1324 = vadd.f32 %v1079, %v1323
      %1325 = vmatprep.mubr.f32.mxu0 0.0
      %1326 = vmatmul.mubr.f32.gmra.mrb[0].mxu0 %v1107
      %v1327 = vpop.f32.mrb[0].mxu0
      %v1328 = vadd.f32 %v1084, %v1327
      %v1329 = vpop.f32.mrb[0].mxu0
      %v1330 = vadd.f32 %v1084, %v1329
      %1331 = vmatprep.mubr.f32.mxu0 0.0
      %1332 = vmatmul.mubr.f32.gmra.mrb[0].mxu0 %v1110
      %v1333 = vpop.f32.mrb[0].mxu0
      %v1334 = vadd.f32 %v1089, %v1333
      %v1335 = vpop.f32.mrb[0].mxu0
      %v1336 = vadd.f32 %v1089, %v1335
      %1337 = vdwg.mxu0
      %v1338 = vtanh.pop %v1191
      %v1339 = vtanh.pop %v1193
      %v1340 = vtanh.pop %v1298
      %v1341 = vtanh.pop %v1300
      %v1342 = vtanh.pop %v1197
      %v1343 = vtanh.pop %v1199
      %v1344 = vtanh.pop %v1304
      %v1345 = vtanh.pop %v1306
      %v1346 = vtanh.pop %v1203
      %v1347 = vtanh.pop %v1205
      %v1348 = vtanh.pop %v1310
      %v1349 = vtanh.pop %v1312
      %v1350 = vtanh.pop %v1209
      %v1351 = vtanh.pop %v1211
      %v1352 = vtanh.pop %v1316
      %v1353 = vtanh.pop %v1318
      %v1354 = vtanh.pop %v1215
      %v1355 = vtanh.pop %v1217
      %v1356 = vtanh.pop %v1322
      %v1357 = vtanh.pop %v1324
      %v1358 = vtanh.pop %v1221
      %v1359 = vtanh.pop %v1223
      %v1360 = vtanh.pop %v1328
      %v1361 = vtanh.pop %v1330
      %v1362 = vtanh.pop %v1227
      %v1363 = vtanh.pop %v1229
      %v1364 = vtanh.pop %v1334
      %v1365 = vtanh.pop %v1336
      %v1366 = vld [vmem:[%s9] sm:$0x1]
      %v1367 = vld [vmem:[#allocation2] sm:$0x1]
      %1369 = vset.pattern.permute.xlu0 0
      %1370 = vperm.xlu0 %1369, %v1367
      %v1371 = vpop.permute.xlu0 %1370
      %v1373 = vlaneseq
      %v1374 = vshrl.u32 %v1373, 7
      %v1375 = vsub.s32 0, %v1374
      %v1376 = vrot.slane %v1371, %v1375
      %v1378 = vsel %vm765, %v1366, 0
      %v1381 = vsel %vm787, %v1362, 0
      %v1384 = vsel %vm787, %v1363, 0
      %v1387 = vsel %vm787, %v1364, 0
      %v1390 = vsel %vm787, %v1365, 0
      %1392 = vmatprep.subr.mxu0 %v1339
      %1393 = vmatpush1.msra.mxu0 %v1338
      %1394 = vmatprep.subr.mxu0 %v1343
      %1395 = vmatpush1.msra.mxu0 %v1342
      %1396 = vmatprep.subr.mxu0 %v1347
      %1397 = vmatpush1.msra.mxu0 %v1346
      %1398 = vmatprep.subr.mxu0 %v1351
      %1399 = vmatpush1.msra.mxu0 %v1350
      %1400 = vmatprep.subr.mxu0 %v1355
      %1401 = vmatpush1.msra.mxu0 %v1354
      %1402 = vmatprep.subr.mxu0 %v1359
      %1403 = vmatpush1.msra.mxu0 %v1358
      %1404 = vmatprep.subr.mxu0 %v1384
      %1405 = vmatpush1.msra.mxu0 %v1381
      %1406 = vmatprep.subr.mxu0 0.0
      %1407 = vmatpush1.msra.mxu0 0.0
      %1408 = vmatprep.subr.mxu0 0.0
      %1409 = vmatpush1.msra.mxu0 0.0
      %1410 = vmatprep.subr.mxu0 0.0
      %1411 = vmatpush1.msra.mxu0 0.0
      %1412 = vmatprep.subr.mxu0 0.0
      %1413 = vmatpush1.msra.mxu0 0.0
      %1414 = vmatprep.subr.mxu0 0.0
      %1415 = vmatpush1.msra.mxu0 0.0
      %1416 = vmatprep.subr.mxu0 0.0
      %1417 = vmatpush1.msra.mxu0 0.0
      %1418 = vmatprep.subr.mxu0 0.0
      %1419 = vmatpush1.msra.mxu0 0.0
      %1420 = vmatprep.subr.mxu0 0.0
      %1421 = vmatpush1.msra.mxu0 0.0
      %1422 = vmatprep.subr.mxu0 0.0
      %1423 = vmatpush1.msra.mxu0 0.0
      %1424 = vmatprep.subr.mxu0 0.0
      %1425 = vmatpush1.msra.mxu0 0.0
      %1426 = vmatprep.subr.mxu0 0.0
      %1427 = vmatpush1.msra.mxu0 0.0
      %1428 = vmatprep.subr.mxu0 0.0
      %1429 = vmatpush1.msra.mxu0 0.0
      %1430 = vmatprep.subr.mxu0 0.0
      %1431 = vmatpush1.msra.mxu0 0.0
      %1432 = vmatprep.subr.mxu0 0.0
      %1433 = vmatpush1.msra.mxu0 0.0
      %1434 = vmatprep.subr.mxu0 0.0
      %1435 = vmatpush1.msra.mxu0 0.0
      %1436 = vmatprep.subr.mxu0 0.0
      %1437 = vmatpush1.msra.mxu0 0.0
      %1438 = vmatprep.subr.mxu0 0.0
      %1439 = vmatpush1.msra.mxu0 0.0
      %1440 = vmatprep.subr.mxu0 0.0
      %1441 = vmatpush1.msra.mxu0 0.0
      %1442 = vmatprep.subr.mxu0 0.0
      %1443 = vmatpush1.msra.mxu0 0.0
      %1444 = vmatprep.subr.mxu0 0.0
      %1445 = vmatpush1.msra.mxu0 0.0
      %1446 = vmatprep.subr.mxu0 0.0
      %1447 = vmatpush1.msra.mxu0 0.0
      %1448 = vmatprep.subr.mxu0 0.0
      %1449 = vmatpush1.msra.mxu0 0.0
      %1450 = vmatprep.subr.mxu0 0.0
      %1451 = vmatpush1.msra.mxu0 0.0
      %1452 = vmatprep.subr.mxu0 0.0
      %1453 = vmatpush1.msra.mxu0 0.0
      %1454 = vmatprep.subr.mxu0 0.0
      %1455 = vmatpush1.msra.mxu0 0.0
      %1456 = vmatprep.mubr.f32.mxu0 0.0
      %1457 = vmatmul.mubr.f32.gmra.mrb[0].mxu0 %v1378
      %v1458 = vpop.f32.mrb[0].mxu0
      %v1459 = vadd.f32 %v1376, %v1458
      %v1460 = vpop.f32.mrb[0].mxu0
      %v1461 = vadd.f32 %v1376, %v1460
      %1462 = vdwg.mxu0
      %1463 = vmatprep.subr.mxu0 %v1341
      %1464 = vmatpush1.msra.mxu0 %v1340
      %1465 = vmatprep.subr.mxu0 %v1345
      %1466 = vmatpush1.msra.mxu0 %v1344
      %1467 = vmatprep.subr.mxu0 %v1349
      %1468 = vmatpush1.msra.mxu0 %v1348
      %1469 = vmatprep.subr.mxu0 %v1353
      %1470 = vmatpush1.msra.mxu0 %v1352
      %1471 = vmatprep.subr.mxu0 %v1357
      %1472 = vmatpush1.msra.mxu0 %v1356
      %1473 = vmatprep.subr.mxu0 %v1361
      %1474 = vmatpush1.msra.mxu0 %v1360
      %1475 = vmatprep.subr.mxu0 %v1390
      %1476 = vmatpush1.msra.mxu0 %v1387
      %1477 = vmatprep.subr.mxu0 0.0
      %1478 = vmatpush1.msra.mxu0 0.0
      %1479 = vmatprep.subr.mxu0 0.0
      %1480 = vmatpush1.msra.mxu0 0.0
      %1481 = vmatprep.subr.mxu0 0.0
      %1482 = vmatpush1.msra.mxu0 0.0
      %1483 = vmatprep.subr.mxu0 0.0
      %1484 = vmatpush1.msra.mxu0 0.0
      %1485 = vmatprep.subr.mxu0 0.0
      %1486 = vmatpush1.msra.mxu0 0.0
      %1487 = vmatprep.subr.mxu0 0.0
      %1488 = vmatpush1.msra.mxu0 0.0
      %1489 = vmatprep.subr.mxu0 0.0
      %1490 = vmatpush1.msra.mxu0 0.0
      %1491 = vmatprep.subr.mxu0 0.0
      %1492 = vmatpush1.msra.mxu0 0.0
      %1493 = vmatprep.subr.mxu0 0.0
      %1494 = vmatpush1.msra.mxu0 0.0
      %1495 = vmatprep.subr.mxu0 0.0
      %1496 = vmatpush1.msra.mxu0 0.0
      %1497 = vmatprep.subr.mxu0 0.0
      %1498 = vmatpush1.msra.mxu0 0.0
      %1499 = vmatprep.subr.mxu0 0.0
      %1500 = vmatpush1.msra.mxu0 0.0
      %1501 = vmatprep.subr.mxu0 0.0
      %1502 = vmatpush1.msra.mxu0 0.0
      %1503 = vmatprep.subr.mxu0 0.0
      %1504 = vmatpush1.msra.mxu0 0.0
      %1505 = vmatprep.subr.mxu0 0.0
      %1506 = vmatpush1.msra.mxu0 0.0
      %1507 = vmatprep.subr.mxu0 0.0
      %1508 = vmatpush1.msra.mxu0 0.0
      %1509 = vmatprep.subr.mxu0 0.0
      %1510 = vmatpush1.msra.mxu0 0.0
      %1511 = vmatprep.subr.mxu0 0.0
      %1512 = vmatpush1.msra.mxu0 0.0
      %1513 = vmatprep.subr.mxu0 0.0
      %1514 = vmatpush1.msra.mxu0 0.0
      %1515 = vmatprep.subr.mxu0 0.0
      %1516 = vmatpush1.msra.mxu0 0.0
      %1517 = vmatprep.subr.mxu0 0.0
      %1518 = vmatpush1.msra.mxu0 0.0
      %1519 = vmatprep.subr.mxu0 0.0
      %1520 = vmatpush1.msra.mxu0 0.0
      %1521 = vmatprep.subr.mxu0 0.0
      %1522 = vmatpush1.msra.mxu0 0.0
      %1523 = vmatprep.subr.mxu0 0.0
      %1524 = vmatpush1.msra.mxu0 0.0
      %1525 = vmatprep.subr.mxu0 0.0
      %1526 = vmatpush1.msra.mxu0 0.0
      %1527 = vmatprep.mubr.f32.mxu0 0.0
      %1528 = vmatmul.mubr.f32.gmra.mrb[0].mxu0 %v1378
      %v1529 = vpop.f32.mrb[0].mxu0
      %v1530 = vadd.f32 %v1376, %v1529
      %v1531 = vpop.f32.mrb[0].mxu0
      %v1532 = vadd.f32 %v1376, %v1531
      %1533 = vdwg.mxu0
      %v1538 = vcombine.low %v1459, %v1461
      %v1539 = vcombine.low %v1530, %v1532
      %v1541 = vunpack.c.l.s4 1966171168
      %v1542 = vunpack.c.0.s8 %v1541
      %v1543 = vlaneseq
      %v1544 = vshrl.u32 %v1543, 7
      %v1545 = vsub.s32 %v1542, %v1544
      %v1546 = vrot.slane %v1538, %v1545
      %v1548 = vunpack.c.l.s4 1966171168
      %v1549 = vunpack.c.0.s8 %v1548
      %v1550 = vlaneseq
      %v1551 = vshrl.u32 %v1550, 7
      %v1552 = vsub.s32 %v1549, %v1551
      %v1553 = vrot.slane %v1539, %v1552
      %v1554 = vcombine.low %v1546, %v1553
      %v1556 = vunpack.c.l.s4 1966171168
      %v1557 = vunpack.c.0.s8 %v1556
      %v1558 = vlaneseq
      %v1559 = vshrl.u32 %v1558, 7
      %v1560 = vsub.s32 %v1557, %v1559
      %v1561 = vrot.slane %v1554, %v1560
      %v1563 = vlaneseq
      %vm1564 = vcmp.ge.s32.totalorder %v1563, 0
      %vm1565 = vcmp.lt.s32.totalorder %v1563, 512
      %vm1566 = vmand %vm1564, %vm1565
      %1567 = vst.msk [vmem:[%s404] sm:$0xf] %vm1566, %v1561
      %s1568 = smul.u32 4, %s24
      %p1569 = scmp.lt.s32.totalorder %s1568, 7
      %s1570 = scalar_select %p1569, %s1568, 7
      %s1571 = scalar_lea.vmem %s11, %s1570
      // Predicated region
      $region65: #{pinn_forward.1} parent=63 // pred_check
        %p1572 = pneg %p283
      $region66: #{pinn_forward.1} parent=63 // pred_check_branch
        %1574 = sbr.rel (%p1572) target = $region68
      $region67: #{pinn_forward.1} parent=63 // pred_region
        %s1575 = smul.u32 4, %s24
      $region68: #{pinn_forward.1} parent=63 // pred_fallthru
        _
    $region64: #{pinn_forward.1} parent=5 // pred_fallthru
      _
    %p1576 = scmp.le.s32.totalorder 2, %s19
    // Predicated region
    $region69: #{pinn_forward.1} parent=5 // pred_check
      %p1577 = pneg %p1576
    $region70: #{pinn_forward.1} parent=5 // pred_check_branch
      %1579 = sbr.rel (%p1577) target = $region72
    $region71: #{pinn_forward.1} parent=5 // pred_region
      %s1580 = ssub.s32 %s19, 2
      // Predicated region
      $region73: #{pinn_forward.1} parent=71 // pred_check
        %p1581 = pneg %p289
      $region74: #{pinn_forward.1} parent=71 // pred_check_branch
        %1583 = sbr.rel (%p1581) target = $region76
      $region75: #{pinn_forward.1} parent=71 // pred_region
        %s1584 = smul.u32 4, %s25
        %p1585 = scmp.lt.s32.totalorder %s1584, 7
        %s1586 = scalar_select %p1585, %s1584, 7
        %s1587 = scalar_lea.vmem %s11, %s1586
      $region76: #{pinn_forward.1} parent=71 // pred_fallthru
        _
    $region72: #{pinn_forward.1} parent=5 // pred_fallthru
      _
  $region6: #{pinn_forward.1} parent=0 // loop_footer
    %s23 = sadd.s32 1, %s19
  $region7: #{pinn_forward.1} parent=0 // loop_footer_branch
    %18 = sbr.rel target = $region3
  $region8: #{pinn_forward.1} parent=0 // loop_exit
    _

</llo_original>
